<compile_context>
chip_gen: v5e
topology: v5e:2x2
jax: 0.10.0
libtpu: 0.0.40
codegen_flags: <defaults>
</compile_context>

<pallas_src>
import numpy as np
import jax
import jax.numpy as jnp
from jax.experimental import pallas as pl
from jax.experimental.pallas import tpu as pltpu

_LANE = 128                     # pixels per chunk == lane width of each matmul RHS
_GROUP_ROWS = 8                 # chunks per store group -> full (8, 128) stores
_GROUP = _LANE * _GROUP_ROWS    # 1024 pixels per group
_MAX_TILE = 16384               # pixels per grid step (double-buffered ~1 MiB VMEM)
_F = 6                          # features: r, g, b, x*sw, y*sw, 1


def _slic_labels_kernel(p_ref, cs_ref, labels_ref):
    # p_ref      : (chunks_per_tile, F, 128) bf16  pixel features, pixels on lanes
    # cs_ref     : (K, F)                    bf16  centers with -2*c, ||c||^2 folded in
    # labels_ref : (groups_per_tile, 8, 128) int32 SLIC labels (start_label = 1)
    K = cs_ref.shape[0]
    n_groups = labels_ref.shape[0]
    cs = cs_ref[...]                                               # resident operand
    # Hoisted once — JAX does not CSE broadcast/iota inside loops.
    row = jax.lax.broadcasted_iota(jnp.int32, (K, _LANE), 0)       # (K, 128)

    def group_body(g, carry):
        labs = []
        for r in range(_GROUP_ROWS):            # static 8-chunk unroll: ILP for LLO
            cols = p_ref[g * _GROUP_ROWS + r]                      # (F, 128) bf16
            # dist' = -2 c.p + ||c||^2   (||p||^2 dropped: argmin-invariant per pixel)
            d = jnp.dot(cs, cols, preferred_element_type=jnp.float32)   # (K, 128) f32
            md = jnp.min(d, axis=0, keepdims=True)                      # (1, 128)
            # smallest index among ties, like np.argmin
            labs.append(jnp.min(jnp.where(d <= md, row, K),
                                axis=0, keepdims=True).astype(jnp.int32))
        # One full-tile (8, 128) store per group instead of 8 masked 1-sublane stores.
        labels_ref[g] = jnp.concatenate(labs, axis=0) + 1          # start_label = 1
        return carry

    jax.lax.fori_loop(0, n_groups, group_body, 0)


def propose_init_mask(image, coords, *, n_centers_h=16, n_centers_w=8,
                      compactness=10.0, max_tile=_MAX_TILE):
    """Pallas equivalent of BasePredictor.propose_init_mask.

    image : (H, W, 3) float32 RGB (HWC layout, like `inpts`)
    coords: (x, y) prompt coordinates; seed label taken at [y, x]
    returns (mask (H, W) int32, segments (H, W) int32)
    """
    H, W, _ = image.shape
    N = H * W
    K = n_centers_h * n_centers_w                        # ~n_segments

    # SLIC spatial weighting: D^2 = dc^2 + (m/S)^2 * ds^2, S = sqrt(N/K)
    sw = np.float32(compactness / np.sqrt(N / K))

    # ---- pixel features [r, g, b, x*sw, y*sw, 1] in bf16 (MXU-native) -----
    yy, xx = jnp.meshgrid(jnp.arange(H, dtype=jnp.float32),
                          jnp.arange(W, dtype=jnp.float32), indexing="ij")
    feats = jnp.concatenate([
        image.reshape(N, 3),
        (xx * sw).reshape(N, 1),
        (yy * sw).reshape(N, 1),
        jnp.ones((N, 1), jnp.float32),     # constant-1 column carries ||c||^2
    ], axis=1).astype(jnp.bfloat16)        # (N, 6)

    # ---- grid-initialized centers (deterministic, like SLIC init) ---------
    cy = (jnp.arange(n_centers_h, dtype=jnp.float32) + 0.5) * H / n_centers_h
    cx = (jnp.arange(n_centers_w, dtype=jnp.float32) + 0.5) * W / n_centers_w
    gy, gx = jnp.meshgrid(cy, cx, indexing="ij")
    gy = gy.reshape(-1)
    gx = gx.reshape(-1)
    ci = jnp.clip(gy.astype(jnp.int32), 0, H - 1)
    cj = jnp.clip(gx.astype(jnp.int32), 0, W - 1)
    centers = jnp.concatenate(
        [image[ci, cj, :], (gx * sw)[:, None], (gy * sw)[:, None]], axis=-1)  # (K, 5)
    c2 = jnp.sum(centers * centers, axis=-1, keepdims=True)                   # (K, 1)
    # Fold -2 and ||c||^2 into the tiny (K, 6) matrix once, in the wrapper.
    cs = jnp.concatenate([-2.0 * centers, c2], axis=-1).astype(jnp.bfloat16)  # (K, 6)

    # ---- tiling: chunk-major pixel layout, >= 2 tiles when possible -------
    n_min = pl.cdiv(N, _GROUP) * _GROUP
    half = pl.cdiv(n_min // _GROUP, 2) * _GROUP     # v7x megacore: aim for grid >= 2
    tile_n = int(min(max_tile, max(_GROUP, half)))  # multiple of 1024
    n_pad = pl.cdiv(n_min, tile_n) * tile_n
    total_chunks = n_pad // _LANE
    total_groups = n_pad // _GROUP
    chunks_per_tile = tile_n // _LANE
    groups_per_tile = tile_n // _GROUP
    grid = (n_pad // tile_n,)

    p = jnp.pad(feats, ((0, n_pad - N), (0, 0)))                   # (n_pad, 6)
    p = p.reshape(total_chunks, _LANE, _F).transpose(0, 2, 1)      # (chunks, 6, 128)

    grid_spec = pltpu.PrefetchScalarGridSpec(
        num_scalar_prefetch=0,
        grid=grid,
        in_specs=[
            pl.BlockSpec((chunks_per_tile, _F, _LANE), lambda i: (i, 0, 0)),
            pl.BlockSpec((K, _F), lambda i: (0, 0)),               # centers resident
        ],
        out_specs=pl.BlockSpec((groups_per_tile, _GROUP_ROWS, _LANE),
                               lambda i: (i, 0, 0)),
    )

    labels = pl.pallas_call(
        _slic_labels_kernel,
        out_shape=jax.ShapeDtypeStruct((total_groups, _GROUP_ROWS, _LANE), jnp.int32),
        grid_spec=grid_spec,
        compiler_params=pltpu.CompilerParams(
            dimension_semantics=("parallel",)),
    )(p, cs)

    # Padded pixels (N..n_pad) hold garbage labels; keep the [:N] slice.
    segments = labels.reshape(-1)[:N].reshape(H, W)
    # Reference epilogue, using the kernel's *own* segments for the seed label,
    # so `mask[y, x] == 1` holds bit-exactly (no bf16 tie-break risk).
    pre_sp = segments[coords[1], coords[0]]
    mask = (segments == pre_sp).astype(jnp.int32)
    return mask, segments


if __name__ == "__main__":
    key = jax.random.PRNGKey(0)
    H, W = 16, 16
    # (H, W, 3) RGB image, deterministic
    image = jax.random.uniform(key, (H, W, 3), dtype=jnp.float32) * 100.0
    coords = (5, 7)  # (x, y) prompt, like prompts[0]['coords']

    mask, segments = propose_init_mask(image, coords)
    mask = jax.block_until_ready(mask)
    segments = jax.block_until_ready(segments)

    # sanity invariants of propose_init_mask
    assert mask.shape == (H, W) and mask.dtype == jnp.int32
    assert segments.shape == (H, W) and segments.dtype == jnp.int32
    assert int(mask[coords[1], coords[0]]) == 1      # seed pixel in its own segment
    assert int(segments.min()) >= 1                  # start_label=1
    assert int(segments.max()) <= 128
    assert int(mask.sum()) >= 1

    print("KERNEL_OK")
</pallas_src>

<mosaic_0001>
module attributes {stable_mosaic.version = 11 : i64} {
  func.func @_slic_labels_kernel(%arg0: i32, %arg1: memref<8x6x128xbf16, #tpu.memory_space<vmem>>, %arg2: memref<128x6xbf16, #tpu.memory_space<vmem>>, %arg3: memref<1x8x128xi32, #tpu.memory_space<vmem>>) attributes {dimension_semantics = [#tpu.dimension_semantics<parallel>], iteration_bounds = array<i64: 1>, scalar_prefetch = 0 : i64, scratch_operands = 0 : i64, tpu.core_type = #tpu.core_type<tc>, window_params = [{transform_indices = @transform_0, window_bounds = array<i64: 8, 6, 128>}, {pipeline_mode = #tpu.pipeline_mode<synchronous>, transform_indices = @transform_1, window_bounds = array<i64: 128, 6>}, {transform_indices = @transform_2, window_bounds = array<i64: 1, 8, 128>}]} {
    %c0 = arith.constant 0 : index
    %c0_0 = arith.constant 0 : index
    %0 = vector.load %arg2[%c0, %c0_0] : memref<128x6xbf16, #tpu.memory_space<vmem>>, vector<128x6xbf16>
    %1 = tpu.iota {dimensions = array<i32: 0>} : vector<128x128xi32>
    %c0_i32 = arith.constant 0 : i32
    %c8_i32 = arith.constant 8 : i32
    %2 = arith.muli %c0_i32, %c8_i32 : i32
    %c0_i32_1 = arith.constant 0 : i32
    %3 = arith.addi %2, %c0_i32_1 : i32
    %4 = arith.index_cast %3 : i32 to index
    %c0_2 = arith.constant 0 : index
    %c0_3 = arith.constant 0 : index
    %5 = vector.load %arg1[%4, %c0_2, %c0_3] : memref<8x6x128xbf16, #tpu.memory_space<vmem>>, vector<1x6x128xbf16>
    %6 = vector.shape_cast %5 : vector<1x6x128xbf16> to vector<6x128xbf16>
    %cst = arith.constant dense<0.000000e+00> : vector<128x128xf32>
    %7 = tpu.matmul %0, %6, %cst {dimension_numbers = #tpu.dot_dimension_numbers<[1], [0], [0], [1], [0, 0, 1, 1], [], []>} : vector<128x6xbf16>, vector<6x128xbf16>, vector<128x128xf32> -> vector<128x128xf32>
    %cst_4 = arith.constant dense<0x7F800000> : vector<128xf32>
    %8 = vector.multi_reduction <minimumf>, %7, %cst_4 [0] : vector<128x128xf32> to vector<128xf32>
    %9 = vector.shape_cast %8 : vector<128xf32> to vector<1x128xf32>
    %10 = vector.broadcast %9 : vector<1x128xf32> to vector<128x128xf32>
    %11 = arith.cmpf ole, %7, %10 : vector<128x128xf32>
    %c128_i32 = arith.constant 128 : i32
    %12 = vector.broadcast %c128_i32 : i32 to vector<128x128xi32>
    %13 = arith.select %11, %1, %12 : vector<128x128xi1>, vector<128x128xi32>
    %cst_5 = arith.constant dense<2147483647> : vector<128xi32>
    %14 = vector.multi_reduction <minsi>, %13, %cst_5 [0] : vector<128x128xi32> to vector<128xi32>
    %15 = vector.shape_cast %14 : vector<128xi32> to vector<1x128xi32>
    %c8_i32_6 = arith.constant 8 : i32
    %16 = arith.muli %c0_i32, %c8_i32_6 : i32
    %c1_i32 = arith.constant 1 : i32
    %17 = arith.addi %16, %c1_i32 : i32
    %18 = arith.index_cast %17 : i32 to index
    %c0_7 = arith.constant 0 : index
    %c0_8 = arith.constant 0 : index
    %19 = vector.load %arg1[%18, %c0_7, %c0_8] : memref<8x6x128xbf16, #tpu.memory_space<vmem>>, vector<1x6x128xbf16>
    %20 = vector.shape_cast %19 : vector<1x6x128xbf16> to vector<6x128xbf16>
    %cst_9 = arith.constant dense<0.000000e+00> : vector<128x128xf32>
    %21 = tpu.matmul %0, %20, %cst_9 {dimension_numbers = #tpu.dot_dimension_numbers<[1], [0], [0], [1], [0, 0, 1, 1], [], []>} : vector<128x6xbf16>, vector<6x128xbf16>, vector<128x128xf32> -> vector<128x128xf32>
    %cst_10 = arith.constant dense<0x7F800000> : vector<128xf32>
    %22 = vector.multi_reduction <minimumf>, %21, %cst_10 [0] : vector<128x128xf32> to vector<128xf32>
    %23 = vector.shape_cast %22 : vector<128xf32> to vector<1x128xf32>
    %24 = vector.broadcast %23 : vector<1x128xf32> to vector<128x128xf32>
    %25 = arith.cmpf ole, %21, %24 : vector<128x128xf32>
    %c128_i32_11 = arith.constant 128 : i32
    %26 = vector.broadcast %c128_i32_11 : i32 to vector<128x128xi32>
    %27 = arith.select %25, %1, %26 : vector<128x128xi1>, vector<128x128xi32>
    %cst_12 = arith.constant dense<2147483647> : vector<128xi32>
    %28 = vector.multi_reduction <minsi>, %27, %cst_12 [0] : vector<128x128xi32> to vector<128xi32>
    %29 = vector.shape_cast %28 : vector<128xi32> to vector<1x128xi32>
    %c8_i32_13 = arith.constant 8 : i32
    %30 = arith.muli %c0_i32, %c8_i32_13 : i32
    %c2_i32 = arith.constant 2 : i32
    %31 = arith.addi %30, %c2_i32 : i32
    %32 = arith.index_cast %31 : i32 to index
    %c0_14 = arith.constant 0 : index
    %c0_15 = arith.constant 0 : index
    %33 = vector.load %arg1[%32, %c0_14, %c0_15] : memref<8x6x128xbf16, #tpu.memory_space<vmem>>, vector<1x6x128xbf16>
    %34 = vector.shape_cast %33 : vector<1x6x128xbf16> to vector<6x128xbf16>
    %cst_16 = arith.constant dense<0.000000e+00> : vector<128x128xf32>
    %35 = tpu.matmul %0, %34, %cst_16 {dimension_numbers = #tpu.dot_dimension_numbers<[1], [0], [0], [1], [0, 0, 1, 1], [], []>} : vector<128x6xbf16>, vector<6x128xbf16>, vector<128x128xf32> -> vector<128x128xf32>
    %cst_17 = arith.constant dense<0x7F800000> : vector<128xf32>
    %36 = vector.multi_reduction <minimumf>, %35, %cst_17 [0] : vector<128x128xf32> to vector<128xf32>
    %37 = vector.shape_cast %36 : vector<128xf32> to vector<1x128xf32>
    %38 = vector.broadcast %37 : vector<1x128xf32> to vector<128x128xf32>
    %39 = arith.cmpf ole, %35, %38 : vector<128x128xf32>
    %c128_i32_18 = arith.constant 128 : i32
    %40 = vector.broadcast %c128_i32_18 : i32 to vector<128x128xi32>
    %41 = arith.select %39, %1, %40 : vector<128x128xi1>, vector<128x128xi32>
    %cst_19 = arith.constant dense<2147483647> : vector<128xi32>
    %42 = vector.multi_reduction <minsi>, %41, %cst_19 [0] : vector<128x128xi32> to vector<128xi32>
    %43 = vector.shape_cast %42 : vector<128xi32> to vector<1x128xi32>
    %c8_i32_20 = arith.constant 8 : i32
    %44 = arith.muli %c0_i32, %c8_i32_20 : i32
    %c3_i32 = arith.constant 3 : i32
    %45 = arith.addi %44, %c3_i32 : i32
    %46 = arith.index_cast %45 : i32 to index
    %c0_21 = arith.constant 0 : index
    %c0_22 = arith.constant 0 : index
    %47 = vector.load %arg1[%46, %c0_21, %c0_22] : memref<8x6x128xbf16, #tpu.memory_space<vmem>>, vector<1x6x128xbf16>
    %48 = vector.shape_cast %47 : vector<1x6x128xbf16> to vector<6x128xbf16>
    %cst_23 = arith.constant dense<0.000000e+00> : vector<128x128xf32>
    %49 = tpu.matmul %0, %48, %cst_23 {dimension_numbers = #tpu.dot_dimension_numbers<[1], [0], [0], [1], [0, 0, 1, 1], [], []>} : vector<128x6xbf16>, vector<6x128xbf16>, vector<128x128xf32> -> vector<128x128xf32>
    %cst_24 = arith.constant dense<0x7F800000> : vector<128xf32>
    %50 = vector.multi_reduction <minimumf>, %49, %cst_24 [0] : vector<128x128xf32> to vector<128xf32>
    %51 = vector.shape_cast %50 : vector<128xf32> to vector<1x128xf32>
    %52 = vector.broadcast %51 : vector<1x128xf32> to vector<128x128xf32>
    %53 = arith.cmpf ole, %49, %52 : vector<128x128xf32>
    %c128_i32_25 = arith.constant 128 : i32
    %54 = vector.broadcast %c128_i32_25 : i32 to vector<128x128xi32>
    %55 = arith.select %53, %1, %54 : vector<128x128xi1>, vector<128x128xi32>
    %cst_26 = arith.constant dense<2147483647> : vector<128xi32>
    %56 = vector.multi_reduction <minsi>, %55, %cst_26 [0] : vector<128x128xi32> to vector<128xi32>
    %57 = vector.shape_cast %56 : vector<128xi32> to vector<1x128xi32>
    %c8_i32_27 = arith.constant 8 : i32
    %58 = arith.muli %c0_i32, %c8_i32_27 : i32
    %c4_i32 = arith.constant 4 : i32
    %59 = arith.addi %58, %c4_i32 : i32
    %60 = arith.index_cast %59 : i32 to index
    %c0_28 = arith.constant 0 : index
    %c0_29 = arith.constant 0 : index
    %61 = vector.load %arg1[%60, %c0_28, %c0_29] : memref<8x6x128xbf16, #tpu.memory_space<vmem>>, vector<1x6x128xbf16>
    %62 = vector.shape_cast %61 : vector<1x6x128xbf16> to vector<6x128xbf16>
    %cst_30 = arith.constant dense<0.000000e+00> : vector<128x128xf32>
    %63 = tpu.matmul %0, %62, %cst_30 {dimension_numbers = #tpu.dot_dimension_numbers<[1], [0], [0], [1], [0, 0, 1, 1], [], []>} : vector<128x6xbf16>, vector<6x128xbf16>, vector<128x128xf32> -> vector<128x128xf32>
    %cst_31 = arith.constant dense<0x7F800000> : vector<128xf32>
    %64 = vector.multi_reduction <minimumf>, %63, %cst_31 [0] : vector<128x128xf32> to vector<128xf32>
    %65 = vector.shape_cast %64 : vector<128xf32> to vector<1x128xf32>
    %66 = vector.broadcast %65 : vector<1x128xf32> to vector<128x128xf32>
    %67 = arith.cmpf ole, %63, %66 : vector<128x128xf32>
    %c128_i32_32 = arith.constant 128 : i32
    %68 = vector.broadcast %c128_i32_32 : i32 to vector<128x128xi32>
    %69 = arith.select %67, %1, %68 : vector<128x128xi1>, vector<128x128xi32>
    %cst_33 = arith.constant dense<2147483647> : vector<128xi32>
    %70 = vector.multi_reduction <minsi>, %69, %cst_33 [0] : vector<128x128xi32> to vector<128xi32>
    %71 = vector.shape_cast %70 : vector<128xi32> to vector<1x128xi32>
    %c8_i32_34 = arith.constant 8 : i32
    %72 = arith.muli %c0_i32, %c8_i32_34 : i32
    %c5_i32 = arith.constant 5 : i32
    %73 = arith.addi %72, %c5_i32 : i32
    %74 = arith.index_cast %73 : i32 to index
    %c0_35 = arith.constant 0 : index
    %c0_36 = arith.constant 0 : index
    %75 = vector.load %arg1[%74, %c0_35, %c0_36] : memref<8x6x128xbf16, #tpu.memory_space<vmem>>, vector<1x6x128xbf16>
    %76 = vector.shape_cast %75 : vector<1x6x128xbf16> to vector<6x128xbf16>
    %cst_37 = arith.constant dense<0.000000e+00> : vector<128x128xf32>
    %77 = tpu.matmul %0, %76, %cst_37 {dimension_numbers = #tpu.dot_dimension_numbers<[1], [0], [0], [1], [0, 0, 1, 1], [], []>} : vector<128x6xbf16>, vector<6x128xbf16>, vector<128x128xf32> -> vector<128x128xf32>
    %cst_38 = arith.constant dense<0x7F800000> : vector<128xf32>
    %78 = vector.multi_reduction <minimumf>, %77, %cst_38 [0] : vector<128x128xf32> to vector<128xf32>
    %79 = vector.shape_cast %78 : vector<128xf32> to vector<1x128xf32>
    %80 = vector.broadcast %79 : vector<1x128xf32> to vector<128x128xf32>
    %81 = arith.cmpf ole, %77, %80 : vector<128x128xf32>
    %c128_i32_39 = arith.constant 128 : i32
    %82 = vector.broadcast %c128_i32_39 : i32 to vector<128x128xi32>
    %83 = arith.select %81, %1, %82 : vector<128x128xi1>, vector<128x128xi32>
    %cst_40 = arith.constant dense<2147483647> : vector<128xi32>
    %84 = vector.multi_reduction <minsi>, %83, %cst_40 [0] : vector<128x128xi32> to vector<128xi32>
    %85 = vector.shape_cast %84 : vector<128xi32> to vector<1x128xi32>
    %c8_i32_41 = arith.constant 8 : i32
    %86 = arith.muli %c0_i32, %c8_i32_41 : i32
    %c6_i32 = arith.constant 6 : i32
    %87 = arith.addi %86, %c6_i32 : i32
    %88 = arith.index_cast %87 : i32 to index
    %c0_42 = arith.constant 0 : index
    %c0_43 = arith.constant 0 : index
    %89 = vector.load %arg1[%88, %c0_42, %c0_43] : memref<8x6x128xbf16, #tpu.memory_space<vmem>>, vector<1x6x128xbf16>
    %90 = vector.shape_cast %89 : vector<1x6x128xbf16> to vector<6x128xbf16>
    %cst_44 = arith.constant dense<0.000000e+00> : vector<128x128xf32>
    %91 = tpu.matmul %0, %90, %cst_44 {dimension_numbers = #tpu.dot_dimension_numbers<[1], [0], [0], [1], [0, 0, 1, 1], [], []>} : vector<128x6xbf16>, vector<6x128xbf16>, vector<128x128xf32> -> vector<128x128xf32>
    %cst_45 = arith.constant dense<0x7F800000> : vector<128xf32>
    %92 = vector.multi_reduction <minimumf>, %91, %cst_45 [0] : vector<128x128xf32> to vector<128xf32>
    %93 = vector.shape_cast %92 : vector<128xf32> to vector<1x128xf32>
    %94 = vector.broadcast %93 : vector<1x128xf32> to vector<128x128xf32>
    %95 = arith.cmpf ole, %91, %94 : vector<128x128xf32>
    %c128_i32_46 = arith.constant 128 : i32
    %96 = vector.broadcast %c128_i32_46 : i32 to vector<128x128xi32>
    %97 = arith.select %95, %1, %96 : vector<128x128xi1>, vector<128x128xi32>
    %cst_47 = arith.constant dense<2147483647> : vector<128xi32>
    %98 = vector.multi_reduction <minsi>, %97, %cst_47 [0] : vector<128x128xi32> to vector<128xi32>
    %99 = vector.shape_cast %98 : vector<128xi32> to vector<1x128xi32>
    %c8_i32_48 = arith.constant 8 : i32
    %100 = arith.muli %c0_i32, %c8_i32_48 : i32
    %c7_i32 = arith.constant 7 : i32
    %101 = arith.addi %100, %c7_i32 : i32
    %102 = arith.index_cast %101 : i32 to index
    %c0_49 = arith.constant 0 : index
    %c0_50 = arith.constant 0 : index
    %103 = vector.load %arg1[%102, %c0_49, %c0_50] : memref<8x6x128xbf16, #tpu.memory_space<vmem>>, vector<1x6x128xbf16>
    %104 = vector.shape_cast %103 : vector<1x6x128xbf16> to vector<6x128xbf16>
    %cst_51 = arith.constant dense<0.000000e+00> : vector<128x128xf32>
    %105 = tpu.matmul %0, %104, %cst_51 {dimension_numbers = #tpu.dot_dimension_numbers<[1], [0], [0], [1], [0, 0, 1, 1], [], []>} : vector<128x6xbf16>, vector<6x128xbf16>, vector<128x128xf32> -> vector<128x128xf32>
    %cst_52 = arith.constant dense<0x7F800000> : vector<128xf32>
    %106 = vector.multi_reduction <minimumf>, %105, %cst_52 [0] : vector<128x128xf32> to vector<128xf32>
    %107 = vector.shape_cast %106 : vector<128xf32> to vector<1x128xf32>
    %108 = vector.broadcast %107 : vector<1x128xf32> to vector<128x128xf32>
    %109 = arith.cmpf ole, %105, %108 : vector<128x128xf32>
    %c128_i32_53 = arith.constant 128 : i32
    %110 = vector.broadcast %c128_i32_53 : i32 to vector<128x128xi32>
    %111 = arith.select %109, %1, %110 : vector<128x128xi1>, vector<128x128xi32>
    %cst_54 = arith.constant dense<2147483647> : vector<128xi32>
    %112 = vector.multi_reduction <minsi>, %111, %cst_54 [0] : vector<128x128xi32> to vector<128xi32>
    %113 = vector.shape_cast %112 : vector<128xi32> to vector<1x128xi32>
    %114 = tpu.concatenate %15, %29, %43, %57, %71, %85, %99, %113 in 0 : vector<1x128xi32>, vector<1x128xi32>, vector<1x128xi32>, vector<1x128xi32>, vector<1x128xi32>, vector<1x128xi32>, vector<1x128xi32>, vector<1x128xi32> -> vector<8x128xi32>
    %c1_i32_55 = arith.constant 1 : i32
    %115 = vector.broadcast %c1_i32_55 : i32 to vector<8x128xi32>
    %116 = arith.addi %114, %115 : vector<8x128xi32>
    %117 = arith.index_cast %c0_i32 : i32 to index
    %c0_56 = arith.constant 0 : index
    %c0_57 = arith.constant 0 : index
    %118 = vector.load %arg3[%117, %c0_56, %c0_57] : memref<1x8x128xi32, #tpu.memory_space<vmem>>, vector<1x8x128xi32>
    %119 = vector.shape_cast %118 : vector<1x8x128xi32> to vector<8x128xi32>
    %120 = vector.shape_cast %116 : vector<8x128xi32> to vector<1x8x128xi32>
    tpu.vector_store %arg3[%117, %c0_56, %c0_57], %120 {strides = array<i32>} : memref<1x8x128xi32, #tpu.memory_space<vmem>>, vector<1x8x128xi32>,
    %c1_i32_58 = arith.constant 1 : i32
    return
  }
  func.func @transform_0(%arg0: i32) -> (i32, i32, i32) {
    %c0_i32 = arith.constant 0 : i32
    %c0_i32_0 = arith.constant 0 : i32
    %c0_i32_1 = arith.constant 0 : i32
    return %arg0, %c0_i32, %c0_i32_0 : i32, i32, i32
  }
  func.func @transform_1(%arg0: i32) -> (i32, i32) {
    %c0_i32 = arith.constant 0 : i32
    %c0_i32_0 = arith.constant 0 : i32
    %c0_i32_1 = arith.constant 0 : i32
    return %c0_i32, %c0_i32_0 : i32, i32
  }
  func.func @transform_2(%arg0: i32) -> (i32, i32, i32) {
    %c0_i32 = arith.constant 0 : i32
    %c0_i32_0 = arith.constant 0 : i32
    %c0_i32_1 = arith.constant 0 : i32
    return %arg0, %c0_i32, %c0_i32_0 : i32, i32, i32
  }
}

</mosaic_0001>

<llo_original>
// kernel: tpu_custom_call.1
$region0: #{tpu_custom_call.1}
  #allocation0 [shape = 'u32[]', space=smem, size = 0x4, offset = 0x4, fixed_abs, tag = 'smem constant byte address 0x4 - core index']
  #allocation1 [shape = 'u32[72,128]{1,0:T(1,128)}', space=vmem, size = 0x9000, scoped, tag = 'internal scratch']
  %s0 = inlined_call_operand.vmem [shape: bf16[8,6,128], index: 0, kind: input, shape index: {}]
  %s1 = inlined_call_operand.vmem [shape: bf16[128,6], index: 1, kind: input, shape index: {}]
  %s2 = inlined_call_operand.hbm [shape: s32[1,8,128], index: 2, kind: output, shape index: {}]
  %s3 = sld [smem:[#allocation0]]
  $region18: #{tpu_custom_call.1} parent=0
    _
  %s5 = ssub.s32 1, %s3
  %s6 = scalar_select 0, %s5, %s3
  $region1: #{tpu_custom_call.1} parent=0
    #allocation2 [shape = 'u8[4096]{0}', space=vmem, size = 0x1000, scoped, tag = 'output window, operand 0, single buffered']
    #allocation3 [shape = 's32[1]{0}', space=sflag, size = 0x4, scoped, tag = 'scoped memory for tpu_custom_call.1']
    %7 = vsyncpa [#allocation3], 0
    // Predicated region
    $region2: #{tpu_custom_call.1} parent=1 // pred_check
      _
    $region3: #{tpu_custom_call.1} parent=1 // pred_check_branch
      %9 = sbr.rel (0) target = $region5
    $region4: #{tpu_custom_call.1} parent=1 // pred_region
      _
    $region5: #{tpu_custom_call.1} parent=1 // pred_fallthru
      _
    // Predicated region
    $region6: #{tpu_custom_call.1} parent=1 // pred_check
      _
    $region7: #{tpu_custom_call.1} parent=1 // pred_check_branch
      %11 = sbr.rel (0) target = $region9
    $region8: #{tpu_custom_call.1} parent=1 // pred_region
      _
    $region9: #{tpu_custom_call.1} parent=1 // pred_fallthru
      _
    %v13 = vld [vmem:[%s1] sm:$0xf]
    %v14 = vld [vmem:[%s1 + $0x4] sm:$0xf]
    %v15 = vld [vmem:[%s1 + $0x8] sm:$0xf]
    %v16 = vld [vmem:[%s1 + $0xc] sm:$0xf]
    %v17 = vld [vmem:[%s1 + $0x10] sm:$0xf]
    %v18 = vld [vmem:[%s1 + $0x14] sm:$0xf]
    %v19 = vld [vmem:[%s1 + $0x18] sm:$0xf]
    %v20 = vld [vmem:[%s1 + $0x1c] sm:$0xf]
    %v21 = vld [vmem:[%s1 + $0x20] sm:$0xf]
    %v22 = vld [vmem:[%s1 + $0x24] sm:$0xf]
    %v23 = vld [vmem:[%s1 + $0x28] sm:$0xf]
    %v24 = vld [vmem:[%s1 + $0x2c] sm:$0xf]
    %v25 = vld [vmem:[%s1 + $0x30] sm:$0xf]
    %v26 = vld [vmem:[%s1 + $0x34] sm:$0xf]
    %v27 = vld [vmem:[%s1 + $0x38] sm:$0xf]
    %v28 = vld [vmem:[%s1 + $0x3c] sm:$0xf]
    %v29 = vlaneseq
    %v30 = vshrl.u32 %v29, 7
    %v31 = vadd.s32 %v30, 8
    %v32 = vadd.s32 %v30, 16
    %v33 = vadd.s32 %v30, 24
    %v34 = vadd.s32 %v30, 32
    %v35 = vadd.s32 %v30, 40
    %v36 = vadd.s32 %v30, 48
    %v37 = vadd.s32 %v30, 56
    %v38 = vadd.s32 %v30, 64
    %v39 = vadd.s32 %v30, 72
    %v40 = vadd.s32 %v30, 80
    %v41 = vadd.s32 %v30, 88
    %v42 = vadd.s32 %v30, 96
    %v43 = vadd.s32 %v30, 104
    %v44 = vadd.s32 %v30, 112
    %v45 = vadd.s32 %v30, 120
    %v46 = vld [vmem:[%s0] sm:$0x7]
    %v63 = vunpack.c.l.b16 %v13
    %v64 = vunpack.c.l.b16 %v14
    %v65 = vunpack.c.l.b16 %v15
    %v66 = vunpack.c.l.b16 %v16
    %v67 = vunpack.c.l.b16 %v17
    %v68 = vunpack.c.l.b16 %v18
    %v69 = vunpack.c.l.b16 %v19
    %v70 = vunpack.c.l.b16 %v20
    %v71 = vunpack.c.l.b16 %v21
    %v72 = vunpack.c.l.b16 %v22
    %v73 = vunpack.c.l.b16 %v23
    %v74 = vunpack.c.l.b16 %v24
    %v75 = vunpack.c.l.b16 %v25
    %v76 = vunpack.c.l.b16 %v26
    %v77 = vunpack.c.l.b16 %v27
    %v78 = vunpack.c.l.b16 %v28
    %v79 = vpack.c.b16 %v64, %v63
    %v80 = vpack.c.b16 %v66, %v65
    %v81 = vpack.c.b16 %v68, %v67
    %v82 = vpack.c.b16 %v70, %v69
    %v83 = vpack.c.b16 %v72, %v71
    %v84 = vpack.c.b16 %v74, %v73
    %v85 = vpack.c.b16 %v76, %v75
    %v86 = vpack.c.b16 %v78, %v77
    %vm87 = vcmask 48128
    %v89 = vsel %vm87, %v79, 0
    %v92 = vsel %vm87, %v80, 0
    %v95 = vsel %vm87, %v81, 0
    %v98 = vsel %vm87, %v82, 0
    %v101 = vsel %vm87, %v83, 0
    %v104 = vsel %vm87, %v84, 0
    %v107 = vsel %vm87, %v85, 0
    %v110 = vsel %vm87, %v86, 0
    %vm112 = vcmask 1042432
    %v114 = vsel %vm112, %v46, 0
    %116 = vmatpush.bf16.msra.mxu0 0
    %117 = vmatpush.bf16.msra.mxu0 0
    %118 = vmatpush.bf16.msra.mxu0 0
    %119 = vmatpush.bf16.msra.mxu0 0
    %120 = vmatpush.bf16.msra.mxu0 0
    %121 = vmatpush.bf16.msra.mxu0 0
    %122 = vmatpush.bf16.msra.mxu0 0
    %123 = vmatpush.bf16.msra.mxu0 %v114
    %124 = vmatmul.bf16.gmra.mxu0 %v89
    %v125 = vpop.f32.mrf.mxu0
    %v126 = vadd.f32 0.0, %v125
    %v127 = vpop.f32.mrf.mxu0
    %v128 = vadd.f32 0.0, %v127
    %129 = vmatmul.bf16.gmra.mxu0 %v92
    %v130 = vpop.f32.mrf.mxu0
    %v131 = vadd.f32 0.0, %v130
    %v132 = vpop.f32.mrf.mxu0
    %v133 = vadd.f32 0.0, %v132
    %134 = vmatmul.bf16.gmra.mxu0 %v95
    %v135 = vpop.f32.mrf.mxu0
    %v136 = vadd.f32 0.0, %v135
    %v137 = vpop.f32.mrf.mxu0
    %v138 = vadd.f32 0.0, %v137
    %139 = vmatmul.bf16.gmra.mxu0 %v98
    %v140 = vpop.f32.mrf.mxu0
    %v141 = vadd.f32 0.0, %v140
    %v142 = vpop.f32.mrf.mxu0
    %v143 = vadd.f32 0.0, %v142
    %144 = vmatmul.bf16.gmra.mxu0 %v101
    %v145 = vpop.f32.mrf.mxu0
    %v146 = vadd.f32 0.0, %v145
    %v147 = vpop.f32.mrf.mxu0
    %v148 = vadd.f32 0.0, %v147
    %149 = vmatmul.bf16.gmra.mxu0 %v104
    %v150 = vpop.f32.mrf.mxu0
    %v151 = vadd.f32 0.0, %v150
    %v152 = vpop.f32.mrf.mxu0
    %v153 = vadd.f32 0.0, %v152
    %154 = vmatmul.bf16.gmra.mxu0 %v107
    %v155 = vpop.f32.mrf.mxu0
    %v156 = vadd.f32 0.0, %v155
    %v157 = vpop.f32.mrf.mxu0
    %v158 = vadd.f32 0.0, %v157
    %159 = vmatmul.bf16.gmra.mxu0 %v110
    %v160 = vpop.f32.mrf.mxu0
    %v161 = vadd.f32 0.0, %v160
    %v162 = vpop.f32.mrf.mxu0
    %v163 = vadd.f32 0.0, %v162
    %164 = vdwg.mxu0
    %v165 = vmin.f32 %v126, %v136
    %v166 = vmin.f32 %v128, %v138
    %v167 = vmin.f32 %v131, %v141
    %v168 = vmin.f32 %v133, %v143
    %v169 = vmin.f32 %v165, %v146
    %v170 = vmin.f32 %v166, %v148
    %v171 = vmin.f32 %v167, %v151
    %v172 = vmin.f32 %v168, %v153
    %v173 = vmin.f32 %v169, %v156
    %v174 = vmin.f32 %v170, %v158
    %v175 = vmin.f32 %v171, %v161
    %v176 = vmin.f32 %v172, %v163
    %v177 = vmin.f32 %v173, %v174
    %v178 = vmin.f32 %v175, %v176
    %v179 = vmin.f32 %v177, %v178
    %v180 = vrot.slane %v179, 4
    %v181 = vmin.f32 %v179, %v180
    %v182 = vrot.slane %v181, 2
    %v183 = vmin.f32 %v181, %v182
    %v184 = vrot.slane %v183, 1
    %v185 = vmin.f32 %v183, %v184
    %vm186 = vcmp.le.f32.partialorder %v126, %v185
    %vm187 = vcmp.le.f32.partialorder %v128, %v185
    %vm188 = vcmp.le.f32.partialorder %v131, %v185
    %vm189 = vcmp.le.f32.partialorder %v133, %v185
    %vm190 = vcmp.le.f32.partialorder %v136, %v185
    %vm191 = vcmp.le.f32.partialorder %v138, %v185
    %vm192 = vcmp.le.f32.partialorder %v141, %v185
    %vm193 = vcmp.le.f32.partialorder %v143, %v185
    %vm194 = vcmp.le.f32.partialorder %v146, %v185
    %vm195 = vcmp.le.f32.partialorder %v148, %v185
    %vm196 = vcmp.le.f32.partialorder %v151, %v185
    %vm197 = vcmp.le.f32.partialorder %v153, %v185
    %vm198 = vcmp.le.f32.partialorder %v156, %v185
    %vm199 = vcmp.le.f32.partialorder %v158, %v185
    %vm200 = vcmp.le.f32.partialorder %v161, %v185
    %vm201 = vcmp.le.f32.partialorder %v163, %v185
    %v202 = vsel %vm186, %v30, 128
    %v203 = vsel %vm187, %v31, 128
    %v204 = vsel %vm188, %v32, 128
    %v205 = vsel %vm189, %v33, 128
    %v206 = vsel %vm190, %v34, 128
    %v207 = vsel %vm191, %v35, 128
    %v208 = vsel %vm192, %v36, 128
    %v209 = vsel %vm193, %v37, 128
    %v210 = vsel %vm194, %v38, 128
    %v211 = vsel %vm195, %v39, 128
    %v212 = vsel %vm196, %v40, 128
    %v213 = vsel %vm197, %v41, 128
    %v214 = vsel %vm198, %v42, 128
    %v215 = vsel %vm199, %v43, 128
    %v216 = vsel %vm200, %v44, 128
    %v217 = vsel %vm201, %v45, 128
    %vm218 = vcmp.lt.s32.totalorder %v202, %v206
    %v219 = vsel %vm218, %v202, %v206
    %vm220 = vcmp.lt.s32.totalorder %v203, %v207
    %v221 = vsel %vm220, %v203, %v207
    %vm222 = vcmp.lt.s32.totalorder %v204, %v208
    %v223 = vsel %vm222, %v204, %v208
    %vm224 = vcmp.lt.s32.totalorder %v205, %v209
    %v225 = vsel %vm224, %v205, %v209
    %vm226 = vcmp.lt.s32.totalorder %v219, %v210
    %v227 = vsel %vm226, %v219, %v210
    %vm228 = vcmp.lt.s32.totalorder %v221, %v211
    %v229 = vsel %vm228, %v221, %v211
    %vm230 = vcmp.lt.s32.totalorder %v223, %v212
    %v231 = vsel %vm230, %v223, %v212
    %vm232 = vcmp.lt.s32.totalorder %v225, %v213
    %v233 = vsel %vm232, %v225, %v213
    %vm234 = vcmp.lt.s32.totalorder %v227, %v214
    %v235 = vsel %vm234, %v227, %v214
    %vm236 = vcmp.lt.s32.totalorder %v229, %v215
    %v237 = vsel %vm236, %v229, %v215
    %vm238 = vcmp.lt.s32.totalorder %v231, %v216
    %v239 = vsel %vm238, %v231, %v216
    %vm240 = vcmp.lt.s32.totalorder %v233, %v217
    %v241 = vsel %vm240, %v233, %v217
    %vm242 = vcmp.lt.s32.totalorder %v235, %v237
    %v243 = vsel %vm242, %v235, %v237
    %vm244 = vcmp.lt.s32.totalorder %v239, %v241
    %v245 = vsel %vm244, %v239, %v241
    %vm246 = vcmp.lt.s32.totalorder %v243, %v245
    %v247 = vsel %vm246, %v243, %v245
    %v248 = vrot.slane %v247, 4
    %vm249 = vcmp.lt.s32.totalorder %v247, %v248
    %v250 = vsel %vm249, %v247, %v248
    %v251 = vrot.slane %v250, 2
    %vm252 = vcmp.lt.s32.totalorder %v250, %v251
    %v253 = vsel %vm252, %v250, %v251
    %v254 = vrot.slane %v253, 1
    %vm255 = vcmp.lt.s32.totalorder %v253, %v254
    %v256 = vsel %vm255, %v253, %v254
    %s257 = scalar_lea.vmem %s0, 4
    %v258 = vld [vmem:[%s257] sm:$0x7]
    %v260 = vsel %vm112, %v258, 0
    %262 = vmatpush.bf16.msra.mxu0 0
    %263 = vmatpush.bf16.msra.mxu0 0
    %264 = vmatpush.bf16.msra.mxu0 0
    %265 = vmatpush.bf16.msra.mxu0 0
    %266 = vmatpush.bf16.msra.mxu0 0
    %267 = vmatpush.bf16.msra.mxu0 0
    %268 = vmatpush.bf16.msra.mxu0 0
    %269 = vmatpush.bf16.msra.mxu0 %v260
    %270 = vmatmul.bf16.gmra.mxu0 %v89
    %v271 = vpop.f32.mrf.mxu0
    %v272 = vadd.f32 0.0, %v271
    %v273 = vpop.f32.mrf.mxu0
    %v274 = vadd.f32 0.0, %v273
    %275 = vmatmul.bf16.gmra.mxu0 %v92
    %v276 = vpop.f32.mrf.mxu0
    %v277 = vadd.f32 0.0, %v276
    %v278 = vpop.f32.mrf.mxu0
    %v279 = vadd.f32 0.0, %v278
    %280 = vmatmul.bf16.gmra.mxu0 %v95
    %v281 = vpop.f32.mrf.mxu0
    %v282 = vadd.f32 0.0, %v281
    %v283 = vpop.f32.mrf.mxu0
    %v284 = vadd.f32 0.0, %v283
    %285 = vmatmul.bf16.gmra.mxu0 %v98
    %v286 = vpop.f32.mrf.mxu0
    %v287 = vadd.f32 0.0, %v286
    %v288 = vpop.f32.mrf.mxu0
    %v289 = vadd.f32 0.0, %v288
    %290 = vmatmul.bf16.gmra.mxu0 %v101
    %v291 = vpop.f32.mrf.mxu0
    %v292 = vadd.f32 0.0, %v291
    %v293 = vpop.f32.mrf.mxu0
    %v294 = vadd.f32 0.0, %v293
    %295 = vmatmul.bf16.gmra.mxu0 %v104
    %v296 = vpop.f32.mrf.mxu0
    %v297 = vadd.f32 0.0, %v296
    %v298 = vpop.f32.mrf.mxu0
    %v299 = vadd.f32 0.0, %v298
    %300 = vmatmul.bf16.gmra.mxu0 %v107
    %v301 = vpop.f32.mrf.mxu0
    %v302 = vadd.f32 0.0, %v301
    %v303 = vpop.f32.mrf.mxu0
    %v304 = vadd.f32 0.0, %v303
    %305 = vmatmul.bf16.gmra.mxu0 %v110
    %v306 = vpop.f32.mrf.mxu0
    %v307 = vadd.f32 0.0, %v306
    %v308 = vpop.f32.mrf.mxu0
    %v309 = vadd.f32 0.0, %v308
    %310 = vdwg.mxu0
    %v311 = vmin.f32 %v272, %v282
    %v312 = vmin.f32 %v274, %v284
    %v313 = vmin.f32 %v277, %v287
    %v314 = vmin.f32 %v279, %v289
    %v315 = vmin.f32 %v311, %v292
    %v316 = vmin.f32 %v312, %v294
    %v317 = vmin.f32 %v313, %v297
    %v318 = vmin.f32 %v314, %v299
    %v319 = vmin.f32 %v315, %v302
    %v320 = vmin.f32 %v316, %v304
    %v321 = vmin.f32 %v317, %v307
    %v322 = vmin.f32 %v318, %v309
    %v323 = vmin.f32 %v319, %v320
    %v324 = vmin.f32 %v321, %v322
    %v325 = vmin.f32 %v323, %v324
    %v326 = vrot.slane %v325, 4
    %v327 = vmin.f32 %v325, %v326
    %v328 = vrot.slane %v327, 2
    %v329 = vmin.f32 %v327, %v328
    %v330 = vrot.slane %v329, 1
    %v331 = vmin.f32 %v329, %v330
    %vm332 = vcmp.le.f32.partialorder %v272, %v331
    %vm333 = vcmp.le.f32.partialorder %v274, %v331
    %vm334 = vcmp.le.f32.partialorder %v277, %v331
    %vm335 = vcmp.le.f32.partialorder %v279, %v331
    %vm336 = vcmp.le.f32.partialorder %v282, %v331
    %vm337 = vcmp.le.f32.partialorder %v284, %v331
    %vm338 = vcmp.le.f32.partialorder %v287, %v331
    %vm339 = vcmp.le.f32.partialorder %v289, %v331
    %vm340 = vcmp.le.f32.partialorder %v292, %v331
    %vm341 = vcmp.le.f32.partialorder %v294, %v331
    %vm342 = vcmp.le.f32.partialorder %v297, %v331
    %vm343 = vcmp.le.f32.partialorder %v299, %v331
    %vm344 = vcmp.le.f32.partialorder %v302, %v331
    %vm345 = vcmp.le.f32.partialorder %v304, %v331
    %vm346 = vcmp.le.f32.partialorder %v307, %v331
    %vm347 = vcmp.le.f32.partialorder %v309, %v331
    %v348 = vsel %vm332, %v30, 128
    %v349 = vsel %vm333, %v31, 128
    %v350 = vsel %vm334, %v32, 128
    %v351 = vsel %vm335, %v33, 128
    %v352 = vsel %vm336, %v34, 128
    %v353 = vsel %vm337, %v35, 128
    %v354 = vsel %vm338, %v36, 128
    %v355 = vsel %vm339, %v37, 128
    %v356 = vsel %vm340, %v38, 128
    %v357 = vsel %vm341, %v39, 128
    %v358 = vsel %vm342, %v40, 128
    %v359 = vsel %vm343, %v41, 128
    %v360 = vsel %vm344, %v42, 128
    %v361 = vsel %vm345, %v43, 128
    %v362 = vsel %vm346, %v44, 128
    %v363 = vsel %vm347, %v45, 128
    %vm364 = vcmp.lt.s32.totalorder %v348, %v352
    %v365 = vsel %vm364, %v348, %v352
    %vm366 = vcmp.lt.s32.totalorder %v349, %v353
    %v367 = vsel %vm366, %v349, %v353
    %vm368 = vcmp.lt.s32.totalorder %v350, %v354
    %v369 = vsel %vm368, %v350, %v354
    %vm370 = vcmp.lt.s32.totalorder %v351, %v355
    %v371 = vsel %vm370, %v351, %v355
    %vm372 = vcmp.lt.s32.totalorder %v365, %v356
    %v373 = vsel %vm372, %v365, %v356
    %vm374 = vcmp.lt.s32.totalorder %v367, %v357
    %v375 = vsel %vm374, %v367, %v357
    %vm376 = vcmp.lt.s32.totalorder %v369, %v358
    %v377 = vsel %vm376, %v369, %v358
    %vm378 = vcmp.lt.s32.totalorder %v371, %v359
    %v379 = vsel %vm378, %v371, %v359
    %vm380 = vcmp.lt.s32.totalorder %v373, %v360
    %v381 = vsel %vm380, %v373, %v360
    %vm382 = vcmp.lt.s32.totalorder %v375, %v361
    %v383 = vsel %vm382, %v375, %v361
    %vm384 = vcmp.lt.s32.totalorder %v377, %v362
    %v385 = vsel %vm384, %v377, %v362
    %vm386 = vcmp.lt.s32.totalorder %v379, %v363
    %v387 = vsel %vm386, %v379, %v363
    %vm388 = vcmp.lt.s32.totalorder %v381, %v383
    %v389 = vsel %vm388, %v381, %v383
    %vm390 = vcmp.lt.s32.totalorder %v385, %v387
    %v391 = vsel %vm390, %v385, %v387
    %vm392 = vcmp.lt.s32.totalorder %v389, %v391
    %v393 = vsel %vm392, %v389, %v391
    %v394 = vrot.slane %v393, 4
    %vm395 = vcmp.lt.s32.totalorder %v393, %v394
    %v396 = vsel %vm395, %v393, %v394
    %v397 = vrot.slane %v396, 2
    %vm398 = vcmp.lt.s32.totalorder %v396, %v397
    %v399 = vsel %vm398, %v396, %v397
    %v400 = vrot.slane %v399, 1
    %vm401 = vcmp.lt.s32.totalorder %v399, %v400
    %v402 = vsel %vm401, %v399, %v400
    %s403 = scalar_lea.vmem %s0, 8
    %v404 = vld [vmem:[%s403] sm:$0x7]
    %v406 = vsel %vm112, %v404, 0
    %408 = vmatpush.bf16.msra.mxu0 0
    %409 = vmatpush.bf16.msra.mxu0 0
    %410 = vmatpush.bf16.msra.mxu0 0
    %411 = vmatpush.bf16.msra.mxu0 0
    %412 = vmatpush.bf16.msra.mxu0 0
    %413 = vmatpush.bf16.msra.mxu0 0
    %414 = vmatpush.bf16.msra.mxu0 0
    %415 = vmatpush.bf16.msra.mxu0 %v406
    %416 = vmatmul.bf16.gmra.mxu0 %v89
    %v417 = vpop.f32.mrf.mxu0
    %v418 = vadd.f32 0.0, %v417
    %v419 = vpop.f32.mrf.mxu0
    %v420 = vadd.f32 0.0, %v419
    %421 = vmatmul.bf16.gmra.mxu0 %v92
    %v422 = vpop.f32.mrf.mxu0
    %v423 = vadd.f32 0.0, %v422
    %v424 = vpop.f32.mrf.mxu0
    %v425 = vadd.f32 0.0, %v424
    %426 = vmatmul.bf16.gmra.mxu0 %v95
    %v427 = vpop.f32.mrf.mxu0
    %v428 = vadd.f32 0.0, %v427
    %v429 = vpop.f32.mrf.mxu0
    %v430 = vadd.f32 0.0, %v429
    %431 = vmatmul.bf16.gmra.mxu0 %v98
    %v432 = vpop.f32.mrf.mxu0
    %v433 = vadd.f32 0.0, %v432
    %v434 = vpop.f32.mrf.mxu0
    %v435 = vadd.f32 0.0, %v434
    %436 = vmatmul.bf16.gmra.mxu0 %v101
    %v437 = vpop.f32.mrf.mxu0
    %v438 = vadd.f32 0.0, %v437
    %v439 = vpop.f32.mrf.mxu0
    %v440 = vadd.f32 0.0, %v439
    %441 = vmatmul.bf16.gmra.mxu0 %v104
    %v442 = vpop.f32.mrf.mxu0
    %v443 = vadd.f32 0.0, %v442
    %v444 = vpop.f32.mrf.mxu0
    %v445 = vadd.f32 0.0, %v444
    %446 = vmatmul.bf16.gmra.mxu0 %v107
    %v447 = vpop.f32.mrf.mxu0
    %v448 = vadd.f32 0.0, %v447
    %v449 = vpop.f32.mrf.mxu0
    %v450 = vadd.f32 0.0, %v449
    %451 = vmatmul.bf16.gmra.mxu0 %v110
    %v452 = vpop.f32.mrf.mxu0
    %v453 = vadd.f32 0.0, %v452
    %v454 = vpop.f32.mrf.mxu0
    %v455 = vadd.f32 0.0, %v454
    %456 = vdwg.mxu0
    %v457 = vmin.f32 %v418, %v428
    %v458 = vmin.f32 %v420, %v430
    %v459 = vmin.f32 %v423, %v433
    %v460 = vmin.f32 %v425, %v435
    %v461 = vmin.f32 %v457, %v438
    %v462 = vmin.f32 %v458, %v440
    %v463 = vmin.f32 %v459, %v443
    %v464 = vmin.f32 %v460, %v445
    %v465 = vmin.f32 %v461, %v448
    %v466 = vmin.f32 %v462, %v450
    %v467 = vmin.f32 %v463, %v453
    %v468 = vmin.f32 %v464, %v455
    %v469 = vmin.f32 %v465, %v466
    %v470 = vmin.f32 %v467, %v468
    %v471 = vmin.f32 %v469, %v470
    %v472 = vrot.slane %v471, 4
    %v473 = vmin.f32 %v471, %v472
    %v474 = vrot.slane %v473, 2
    %v475 = vmin.f32 %v473, %v474
    %v476 = vrot.slane %v475, 1
    %v477 = vmin.f32 %v475, %v476
    %vm478 = vcmp.le.f32.partialorder %v418, %v477
    %vm479 = vcmp.le.f32.partialorder %v420, %v477
    %vm480 = vcmp.le.f32.partialorder %v423, %v477
    %vm481 = vcmp.le.f32.partialorder %v425, %v477
    %vm482 = vcmp.le.f32.partialorder %v428, %v477
    %vm483 = vcmp.le.f32.partialorder %v430, %v477
    %vm484 = vcmp.le.f32.partialorder %v433, %v477
    %vm485 = vcmp.le.f32.partialorder %v435, %v477
    %vm486 = vcmp.le.f32.partialorder %v438, %v477
    %vm487 = vcmp.le.f32.partialorder %v440, %v477
    %vm488 = vcmp.le.f32.partialorder %v443, %v477
    %vm489 = vcmp.le.f32.partialorder %v445, %v477
    %vm490 = vcmp.le.f32.partialorder %v448, %v477
    %vm491 = vcmp.le.f32.partialorder %v450, %v477
    %vm492 = vcmp.le.f32.partialorder %v453, %v477
    %vm493 = vcmp.le.f32.partialorder %v455, %v477
    %v494 = vsel %vm478, %v30, 128
    %v495 = vsel %vm479, %v31, 128
    %v496 = vsel %vm480, %v32, 128
    %v497 = vsel %vm481, %v33, 128
    %v498 = vsel %vm482, %v34, 128
    %v499 = vsel %vm483, %v35, 128
    %v500 = vsel %vm484, %v36, 128
    %v501 = vsel %vm485, %v37, 128
    %v502 = vsel %vm486, %v38, 128
    %v503 = vsel %vm487, %v39, 128
    %v504 = vsel %vm488, %v40, 128
    %v505 = vsel %vm489, %v41, 128
    %v506 = vsel %vm490, %v42, 128
    %v507 = vsel %vm491, %v43, 128
    %v508 = vsel %vm492, %v44, 128
    %v509 = vsel %vm493, %v45, 128
    %vm510 = vcmp.lt.s32.totalorder %v494, %v498
    %v511 = vsel %vm510, %v494, %v498
    %vm512 = vcmp.lt.s32.totalorder %v495, %v499
    %v513 = vsel %vm512, %v495, %v499
    %vm514 = vcmp.lt.s32.totalorder %v496, %v500
    %v515 = vsel %vm514, %v496, %v500
    %vm516 = vcmp.lt.s32.totalorder %v497, %v501
    %v517 = vsel %vm516, %v497, %v501
    %vm518 = vcmp.lt.s32.totalorder %v511, %v502
    %v519 = vsel %vm518, %v511, %v502
    %vm520 = vcmp.lt.s32.totalorder %v513, %v503
    %v521 = vsel %vm520, %v513, %v503
    %vm522 = vcmp.lt.s32.totalorder %v515, %v504
    %v523 = vsel %vm522, %v515, %v504
    %vm524 = vcmp.lt.s32.totalorder %v517, %v505
    %v525 = vsel %vm524, %v517, %v505
    %vm526 = vcmp.lt.s32.totalorder %v519, %v506
    %v527 = vsel %vm526, %v519, %v506
    %vm528 = vcmp.lt.s32.totalorder %v521, %v507
    %v529 = vsel %vm528, %v521, %v507
    %vm530 = vcmp.lt.s32.totalorder %v523, %v508
    %v531 = vsel %vm530, %v523, %v508
    %vm532 = vcmp.lt.s32.totalorder %v525, %v509
    %v533 = vsel %vm532, %v525, %v509
    %vm534 = vcmp.lt.s32.totalorder %v527, %v529
    %v535 = vsel %vm534, %v527, %v529
    %vm536 = vcmp.lt.s32.totalorder %v531, %v533
    %v537 = vsel %vm536, %v531, %v533
    %vm538 = vcmp.lt.s32.totalorder %v535, %v537
    %v539 = vsel %vm538, %v535, %v537
    %v540 = vrot.slane %v539, 4
    %vm541 = vcmp.lt.s32.totalorder %v539, %v540
    %v542 = vsel %vm541, %v539, %v540
    %v543 = vrot.slane %v542, 2
    %vm544 = vcmp.lt.s32.totalorder %v542, %v543
    %v545 = vsel %vm544, %v542, %v543
    %v546 = vrot.slane %v545, 1
    %vm547 = vcmp.lt.s32.totalorder %v545, %v546
    %v548 = vsel %vm547, %v545, %v546
    %s549 = scalar_lea.vmem %s0, 12
    %v550 = vld [vmem:[%s549] sm:$0x7]
    %v552 = vsel %vm112, %v550, 0
    %554 = vmatpush.bf16.msra.mxu0 0
    %555 = vmatpush.bf16.msra.mxu0 0
    %556 = vmatpush.bf16.msra.mxu0 0
    %557 = vmatpush.bf16.msra.mxu0 0
    %558 = vmatpush.bf16.msra.mxu0 0
    %559 = vmatpush.bf16.msra.mxu0 0
    %560 = vmatpush.bf16.msra.mxu0 0
    %561 = vmatpush.bf16.msra.mxu0 %v552
    %562 = vmatmul.bf16.gmra.mxu0 %v89
    %v563 = vpop.f32.mrf.mxu0
    %v564 = vadd.f32 0.0, %v563
    %v565 = vpop.f32.mrf.mxu0
    %v566 = vadd.f32 0.0, %v565
    %567 = vmatmul.bf16.gmra.mxu0 %v92
    %v568 = vpop.f32.mrf.mxu0
    %v569 = vadd.f32 0.0, %v568
    %v570 = vpop.f32.mrf.mxu0
    %v571 = vadd.f32 0.0, %v570
    %572 = vmatmul.bf16.gmra.mxu0 %v95
    %v573 = vpop.f32.mrf.mxu0
    %v574 = vadd.f32 0.0, %v573
    %v575 = vpop.f32.mrf.mxu0
    %v576 = vadd.f32 0.0, %v575
    %577 = vmatmul.bf16.gmra.mxu0 %v98
    %v578 = vpop.f32.mrf.mxu0
    %v579 = vadd.f32 0.0, %v578
    %v580 = vpop.f32.mrf.mxu0
    %v581 = vadd.f32 0.0, %v580
    %582 = vmatmul.bf16.gmra.mxu0 %v101
    %v583 = vpop.f32.mrf.mxu0
    %v584 = vadd.f32 0.0, %v583
    %v585 = vpop.f32.mrf.mxu0
    %v586 = vadd.f32 0.0, %v585
    %587 = vmatmul.bf16.gmra.mxu0 %v104
    %v588 = vpop.f32.mrf.mxu0
    %v589 = vadd.f32 0.0, %v588
    %v590 = vpop.f32.mrf.mxu0
    %v591 = vadd.f32 0.0, %v590
    %592 = vmatmul.bf16.gmra.mxu0 %v107
    %v593 = vpop.f32.mrf.mxu0
    %v594 = vadd.f32 0.0, %v593
    %v595 = vpop.f32.mrf.mxu0
    %v596 = vadd.f32 0.0, %v595
    %597 = vmatmul.bf16.gmra.mxu0 %v110
    %v598 = vpop.f32.mrf.mxu0
    %v599 = vadd.f32 0.0, %v598
    %v600 = vpop.f32.mrf.mxu0
    %v601 = vadd.f32 0.0, %v600
    %602 = vdwg.mxu0
    %v603 = vmin.f32 %v564, %v574
    %v604 = vmin.f32 %v566, %v576
    %v605 = vmin.f32 %v569, %v579
    %v606 = vmin.f32 %v571, %v581
    %v607 = vmin.f32 %v603, %v584
    %v608 = vmin.f32 %v604, %v586
    %v609 = vmin.f32 %v605, %v589
    %v610 = vmin.f32 %v606, %v591
    %v611 = vmin.f32 %v607, %v594
    %v612 = vmin.f32 %v608, %v596
    %v613 = vmin.f32 %v609, %v599
    %v614 = vmin.f32 %v610, %v601
    %v615 = vmin.f32 %v611, %v612
    %v616 = vmin.f32 %v613, %v614
    %v617 = vmin.f32 %v615, %v616
    %v618 = vrot.slane %v617, 4
    %v619 = vmin.f32 %v617, %v618
    %v620 = vrot.slane %v619, 2
    %v621 = vmin.f32 %v619, %v620
    %v622 = vrot.slane %v621, 1
    %v623 = vmin.f32 %v621, %v622
    %vm624 = vcmp.le.f32.partialorder %v564, %v623
    %vm625 = vcmp.le.f32.partialorder %v566, %v623
    %vm626 = vcmp.le.f32.partialorder %v569, %v623
    %vm627 = vcmp.le.f32.partialorder %v571, %v623
    %vm628 = vcmp.le.f32.partialorder %v574, %v623
    %vm629 = vcmp.le.f32.partialorder %v576, %v623
    %vm630 = vcmp.le.f32.partialorder %v579, %v623
    %vm631 = vcmp.le.f32.partialorder %v581, %v623
    %vm632 = vcmp.le.f32.partialorder %v584, %v623
    %vm633 = vcmp.le.f32.partialorder %v586, %v623
    %vm634 = vcmp.le.f32.partialorder %v589, %v623
    %vm635 = vcmp.le.f32.partialorder %v591, %v623
    %vm636 = vcmp.le.f32.partialorder %v594, %v623
    %vm637 = vcmp.le.f32.partialorder %v596, %v623
    %vm638 = vcmp.le.f32.partialorder %v599, %v623
    %vm639 = vcmp.le.f32.partialorder %v601, %v623
    %v640 = vsel %vm624, %v30, 128
    %v641 = vsel %vm625, %v31, 128
    %v642 = vsel %vm626, %v32, 128
    %v643 = vsel %vm627, %v33, 128
    %v644 = vsel %vm628, %v34, 128
    %v645 = vsel %vm629, %v35, 128
    %v646 = vsel %vm630, %v36, 128
    %v647 = vsel %vm631, %v37, 128
    %v648 = vsel %vm632, %v38, 128
    %v649 = vsel %vm633, %v39, 128
    %v650 = vsel %vm634, %v40, 128
    %v651 = vsel %vm635, %v41, 128
    %v652 = vsel %vm636, %v42, 128
    %v653 = vsel %vm637, %v43, 128
    %v654 = vsel %vm638, %v44, 128
    %v655 = vsel %vm639, %v45, 128
    %vm656 = vcmp.lt.s32.totalorder %v640, %v644
    %v657 = vsel %vm656, %v640, %v644
    %vm658 = vcmp.lt.s32.totalorder %v641, %v645
    %v659 = vsel %vm658, %v641, %v645
    %vm660 = vcmp.lt.s32.totalorder %v642, %v646
    %v661 = vsel %vm660, %v642, %v646
    %vm662 = vcmp.lt.s32.totalorder %v643, %v647
    %v663 = vsel %vm662, %v643, %v647
    %vm664 = vcmp.lt.s32.totalorder %v657, %v648
    %v665 = vsel %vm664, %v657, %v648
    %vm666 = vcmp.lt.s32.totalorder %v659, %v649
    %v667 = vsel %vm666, %v659, %v649
    %vm668 = vcmp.lt.s32.totalorder %v661, %v650
    %v669 = vsel %vm668, %v661, %v650
    %vm670 = vcmp.lt.s32.totalorder %v663, %v651
    %v671 = vsel %vm670, %v663, %v651
    %vm672 = vcmp.lt.s32.totalorder %v665, %v652
    %v673 = vsel %vm672, %v665, %v652
    %vm674 = vcmp.lt.s32.totalorder %v667, %v653
    %v675 = vsel %vm674, %v667, %v653
    %vm676 = vcmp.lt.s32.totalorder %v669, %v654
    %v677 = vsel %vm676, %v669, %v654
    %vm678 = vcmp.lt.s32.totalorder %v671, %v655
    %v679 = vsel %vm678, %v671, %v655
    %vm680 = vcmp.lt.s32.totalorder %v673, %v675
    %v681 = vsel %vm680, %v673, %v675
    %vm682 = vcmp.lt.s32.totalorder %v677, %v679
    %v683 = vsel %vm682, %v677, %v679
    %vm684 = vcmp.lt.s32.totalorder %v681, %v683
    %v685 = vsel %vm684, %v681, %v683
    %v686 = vrot.slane %v685, 4
    %vm687 = vcmp.lt.s32.totalorder %v685, %v686
    %v688 = vsel %vm687, %v685, %v686
    %v689 = vrot.slane %v688, 2
    %vm690 = vcmp.lt.s32.totalorder %v688, %v689
    %v691 = vsel %vm690, %v688, %v689
    %v692 = vrot.slane %v691, 1
    %vm693 = vcmp.lt.s32.totalorder %v691, %v692
    %v694 = vsel %vm693, %v691, %v692
    %s695 = scalar_lea.vmem %s0, 16
    %v696 = vld [vmem:[%s695] sm:$0x7]
    %v698 = vsel %vm112, %v696, 0
    %700 = vmatpush.bf16.msra.mxu0 0
    %701 = vmatpush.bf16.msra.mxu0 0
    %702 = vmatpush.bf16.msra.mxu0 0
    %703 = vmatpush.bf16.msra.mxu0 0
    %704 = vmatpush.bf16.msra.mxu0 0
    %705 = vmatpush.bf16.msra.mxu0 0
    %706 = vmatpush.bf16.msra.mxu0 0
    %707 = vmatpush.bf16.msra.mxu0 %v698
    %708 = vmatmul.bf16.gmra.mxu0 %v89
    %v709 = vpop.f32.mrf.mxu0
    %v710 = vadd.f32 0.0, %v709
    %v711 = vpop.f32.mrf.mxu0
    %v712 = vadd.f32 0.0, %v711
    %713 = vmatmul.bf16.gmra.mxu0 %v92
    %v714 = vpop.f32.mrf.mxu0
    %v715 = vadd.f32 0.0, %v714
    %v716 = vpop.f32.mrf.mxu0
    %v717 = vadd.f32 0.0, %v716
    %718 = vmatmul.bf16.gmra.mxu0 %v95
    %v719 = vpop.f32.mrf.mxu0
    %v720 = vadd.f32 0.0, %v719
    %v721 = vpop.f32.mrf.mxu0
    %v722 = vadd.f32 0.0, %v721
    %723 = vmatmul.bf16.gmra.mxu0 %v98
    %v724 = vpop.f32.mrf.mxu0
    %v725 = vadd.f32 0.0, %v724
    %v726 = vpop.f32.mrf.mxu0
    %v727 = vadd.f32 0.0, %v726
    %728 = vmatmul.bf16.gmra.mxu0 %v101
    %v729 = vpop.f32.mrf.mxu0
    %v730 = vadd.f32 0.0, %v729
    %v731 = vpop.f32.mrf.mxu0
    %v732 = vadd.f32 0.0, %v731
    %733 = vmatmul.bf16.gmra.mxu0 %v104
    %v734 = vpop.f32.mrf.mxu0
    %v735 = vadd.f32 0.0, %v734
    %v736 = vpop.f32.mrf.mxu0
    %v737 = vadd.f32 0.0, %v736
    %738 = vmatmul.bf16.gmra.mxu0 %v107
    %v739 = vpop.f32.mrf.mxu0
    %v740 = vadd.f32 0.0, %v739
    %v741 = vpop.f32.mrf.mxu0
    %v742 = vadd.f32 0.0, %v741
    %743 = vmatmul.bf16.gmra.mxu0 %v110
    %v744 = vpop.f32.mrf.mxu0
    %v745 = vadd.f32 0.0, %v744
    %v746 = vpop.f32.mrf.mxu0
    %v747 = vadd.f32 0.0, %v746
    %748 = vdwg.mxu0
    %v749 = vmin.f32 %v710, %v720
    %v750 = vmin.f32 %v712, %v722
    %v751 = vmin.f32 %v715, %v725
    %v752 = vmin.f32 %v717, %v727
    %v753 = vmin.f32 %v749, %v730
    %v754 = vmin.f32 %v750, %v732
    %v755 = vmin.f32 %v751, %v735
    %v756 = vmin.f32 %v752, %v737
    %v757 = vmin.f32 %v753, %v740
    %v758 = vmin.f32 %v754, %v742
    %v759 = vmin.f32 %v755, %v745
    %v760 = vmin.f32 %v756, %v747
    %v761 = vmin.f32 %v757, %v758
    %v762 = vmin.f32 %v759, %v760
    %v763 = vmin.f32 %v761, %v762
    %v764 = vrot.slane %v763, 4
    %v765 = vmin.f32 %v763, %v764
    %v766 = vrot.slane %v765, 2
    %v767 = vmin.f32 %v765, %v766
    %v768 = vrot.slane %v767, 1
    %v769 = vmin.f32 %v767, %v768
    %vm770 = vcmp.le.f32.partialorder %v710, %v769
    %vm771 = vcmp.le.f32.partialorder %v712, %v769
    %vm772 = vcmp.le.f32.partialorder %v715, %v769
    %vm773 = vcmp.le.f32.partialorder %v717, %v769
    %vm774 = vcmp.le.f32.partialorder %v720, %v769
    %vm775 = vcmp.le.f32.partialorder %v722, %v769
    %vm776 = vcmp.le.f32.partialorder %v725, %v769
    %vm777 = vcmp.le.f32.partialorder %v727, %v769
    %vm778 = vcmp.le.f32.partialorder %v730, %v769
    %vm779 = vcmp.le.f32.partialorder %v732, %v769
    %vm780 = vcmp.le.f32.partialorder %v735, %v769
    %vm781 = vcmp.le.f32.partialorder %v737, %v769
    %vm782 = vcmp.le.f32.partialorder %v740, %v769
    %vm783 = vcmp.le.f32.partialorder %v742, %v769
    %vm784 = vcmp.le.f32.partialorder %v745, %v769
    %vm785 = vcmp.le.f32.partialorder %v747, %v769
    %v786 = vsel %vm770, %v30, 128
    %v787 = vsel %vm771, %v31, 128
    %v788 = vsel %vm772, %v32, 128
    %v789 = vsel %vm773, %v33, 128
    %v790 = vsel %vm774, %v34, 128
    %v791 = vsel %vm775, %v35, 128
    %v792 = vsel %vm776, %v36, 128
    %v793 = vsel %vm777, %v37, 128
    %v794 = vsel %vm778, %v38, 128
    %v795 = vsel %vm779, %v39, 128
    %v796 = vsel %vm780, %v40, 128
    %v797 = vsel %vm781, %v41, 128
    %v798 = vsel %vm782, %v42, 128
    %v799 = vsel %vm783, %v43, 128
    %v800 = vsel %vm784, %v44, 128
    %v801 = vsel %vm785, %v45, 128
    %vm802 = vcmp.lt.s32.totalorder %v786, %v790
    %v803 = vsel %vm802, %v786, %v790
    %vm804 = vcmp.lt.s32.totalorder %v787, %v791
    %v805 = vsel %vm804, %v787, %v791
    %vm806 = vcmp.lt.s32.totalorder %v788, %v792
    %v807 = vsel %vm806, %v788, %v792
    %vm808 = vcmp.lt.s32.totalorder %v789, %v793
    %v809 = vsel %vm808, %v789, %v793
    %vm810 = vcmp.lt.s32.totalorder %v803, %v794
    %v811 = vsel %vm810, %v803, %v794
    %vm812 = vcmp.lt.s32.totalorder %v805, %v795
    %v813 = vsel %vm812, %v805, %v795
    %vm814 = vcmp.lt.s32.totalorder %v807, %v796
    %v815 = vsel %vm814, %v807, %v796
    %vm816 = vcmp.lt.s32.totalorder %v809, %v797
    %v817 = vsel %vm816, %v809, %v797
    %vm818 = vcmp.lt.s32.totalorder %v811, %v798
    %v819 = vsel %vm818, %v811, %v798
    %vm820 = vcmp.lt.s32.totalorder %v813, %v799
    %v821 = vsel %vm820, %v813, %v799
    %vm822 = vcmp.lt.s32.totalorder %v815, %v800
    %v823 = vsel %vm822, %v815, %v800
    %vm824 = vcmp.lt.s32.totalorder %v817, %v801
    %v825 = vsel %vm824, %v817, %v801
    %vm826 = vcmp.lt.s32.totalorder %v819, %v821
    %v827 = vsel %vm826, %v819, %v821
    %vm828 = vcmp.lt.s32.totalorder %v823, %v825
    %v829 = vsel %vm828, %v823, %v825
    %vm830 = vcmp.lt.s32.totalorder %v827, %v829
    %v831 = vsel %vm830, %v827, %v829
    %v832 = vrot.slane %v831, 4
    %vm833 = vcmp.lt.s32.totalorder %v831, %v832
    %v834 = vsel %vm833, %v831, %v832
    %v835 = vrot.slane %v834, 2
    %vm836 = vcmp.lt.s32.totalorder %v834, %v835
    %v837 = vsel %vm836, %v834, %v835
    %v838 = vrot.slane %v837, 1
    %vm839 = vcmp.lt.s32.totalorder %v837, %v838
    %v840 = vsel %vm839, %v837, %v838
    %s841 = scalar_lea.vmem %s0, 20
    %v842 = vld [vmem:[%s841] sm:$0x7]
    %v844 = vsel %vm112, %v842, 0
    %846 = vmatpush.bf16.msra.mxu0 0
    %847 = vmatpush.bf16.msra.mxu0 0
    %848 = vmatpush.bf16.msra.mxu0 0
    %849 = vmatpush.bf16.msra.mxu0 0
    %850 = vmatpush.bf16.msra.mxu0 0
    %851 = vmatpush.bf16.msra.mxu0 0
    %852 = vmatpush.bf16.msra.mxu0 0
    %853 = vmatpush.bf16.msra.mxu0 %v844
    %854 = vmatmul.bf16.gmra.mxu0 %v89
    %v855 = vpop.f32.mrf.mxu0
    %v856 = vadd.f32 0.0, %v855
    %v857 = vpop.f32.mrf.mxu0
    %v858 = vadd.f32 0.0, %v857
    %859 = vmatmul.bf16.gmra.mxu0 %v92
    %v860 = vpop.f32.mrf.mxu0
    %v861 = vadd.f32 0.0, %v860
    %v862 = vpop.f32.mrf.mxu0
    %v863 = vadd.f32 0.0, %v862
    %864 = vmatmul.bf16.gmra.mxu0 %v95
    %v865 = vpop.f32.mrf.mxu0
    %v866 = vadd.f32 0.0, %v865
    %v867 = vpop.f32.mrf.mxu0
    %v868 = vadd.f32 0.0, %v867
    %869 = vmatmul.bf16.gmra.mxu0 %v98
    %v870 = vpop.f32.mrf.mxu0
    %v871 = vadd.f32 0.0, %v870
    %v872 = vpop.f32.mrf.mxu0
    %v873 = vadd.f32 0.0, %v872
    %874 = vmatmul.bf16.gmra.mxu0 %v101
    %v875 = vpop.f32.mrf.mxu0
    %v876 = vadd.f32 0.0, %v875
    %v877 = vpop.f32.mrf.mxu0
    %v878 = vadd.f32 0.0, %v877
    %879 = vmatmul.bf16.gmra.mxu0 %v104
    %v880 = vpop.f32.mrf.mxu0
    %v881 = vadd.f32 0.0, %v880
    %v882 = vpop.f32.mrf.mxu0
    %v883 = vadd.f32 0.0, %v882
    %884 = vmatmul.bf16.gmra.mxu0 %v107
    %v885 = vpop.f32.mrf.mxu0
    %v886 = vadd.f32 0.0, %v885
    %v887 = vpop.f32.mrf.mxu0
    %v888 = vadd.f32 0.0, %v887
    %889 = vmatmul.bf16.gmra.mxu0 %v110
    %v890 = vpop.f32.mrf.mxu0
    %v891 = vadd.f32 0.0, %v890
    %v892 = vpop.f32.mrf.mxu0
    %v893 = vadd.f32 0.0, %v892
    %894 = vdwg.mxu0
    %v895 = vmin.f32 %v856, %v866
    %v896 = vmin.f32 %v858, %v868
    %v897 = vmin.f32 %v861, %v871
    %v898 = vmin.f32 %v863, %v873
    %v899 = vmin.f32 %v895, %v876
    %v900 = vmin.f32 %v896, %v878
    %v901 = vmin.f32 %v897, %v881
    %v902 = vmin.f32 %v898, %v883
    %v903 = vmin.f32 %v899, %v886
    %v904 = vmin.f32 %v900, %v888
    %v905 = vmin.f32 %v901, %v891
    %v906 = vmin.f32 %v902, %v893
    %v907 = vmin.f32 %v903, %v904
    %v908 = vmin.f32 %v905, %v906
    %v909 = vmin.f32 %v907, %v908
    %v910 = vrot.slane %v909, 4
    %v911 = vmin.f32 %v909, %v910
    %v912 = vrot.slane %v911, 2
    %v913 = vmin.f32 %v911, %v912
    %v914 = vrot.slane %v913, 1
    %v915 = vmin.f32 %v913, %v914
    %vm916 = vcmp.le.f32.partialorder %v856, %v915
    %vm917 = vcmp.le.f32.partialorder %v858, %v915
    %vm918 = vcmp.le.f32.partialorder %v861, %v915
    %vm919 = vcmp.le.f32.partialorder %v863, %v915
    %vm920 = vcmp.le.f32.partialorder %v866, %v915
    %vm921 = vcmp.le.f32.partialorder %v868, %v915
    %vm922 = vcmp.le.f32.partialorder %v871, %v915
    %vm923 = vcmp.le.f32.partialorder %v873, %v915
    %vm924 = vcmp.le.f32.partialorder %v876, %v915
    %vm925 = vcmp.le.f32.partialorder %v878, %v915
    %vm926 = vcmp.le.f32.partialorder %v881, %v915
    %vm927 = vcmp.le.f32.partialorder %v883, %v915
    %vm928 = vcmp.le.f32.partialorder %v886, %v915
    %vm929 = vcmp.le.f32.partialorder %v888, %v915
    %vm930 = vcmp.le.f32.partialorder %v891, %v915
    %vm931 = vcmp.le.f32.partialorder %v893, %v915
    %v932 = vsel %vm916, %v30, 128
    %v933 = vsel %vm917, %v31, 128
    %v934 = vsel %vm918, %v32, 128
    %v935 = vsel %vm919, %v33, 128
    %v936 = vsel %vm920, %v34, 128
    %v937 = vsel %vm921, %v35, 128
    %v938 = vsel %vm922, %v36, 128
    %v939 = vsel %vm923, %v37, 128
    %v940 = vsel %vm924, %v38, 128
    %v941 = vsel %vm925, %v39, 128
    %v942 = vsel %vm926, %v40, 128
    %v943 = vsel %vm927, %v41, 128
    %v944 = vsel %vm928, %v42, 128
    %v945 = vsel %vm929, %v43, 128
    %v946 = vsel %vm930, %v44, 128
    %v947 = vsel %vm931, %v45, 128
    %vm948 = vcmp.lt.s32.totalorder %v932, %v936
    %v949 = vsel %vm948, %v932, %v936
    %vm950 = vcmp.lt.s32.totalorder %v933, %v937
    %v951 = vsel %vm950, %v933, %v937
    %vm952 = vcmp.lt.s32.totalorder %v934, %v938
    %v953 = vsel %vm952, %v934, %v938
    %vm954 = vcmp.lt.s32.totalorder %v935, %v939
    %v955 = vsel %vm954, %v935, %v939
    %vm956 = vcmp.lt.s32.totalorder %v949, %v940
    %v957 = vsel %vm956, %v949, %v940
    %vm958 = vcmp.lt.s32.totalorder %v951, %v941
    %v959 = vsel %vm958, %v951, %v941
    %vm960 = vcmp.lt.s32.totalorder %v953, %v942
    %v961 = vsel %vm960, %v953, %v942
    %vm962 = vcmp.lt.s32.totalorder %v955, %v943
    %v963 = vsel %vm962, %v955, %v943
    %vm964 = vcmp.lt.s32.totalorder %v957, %v944
    %v965 = vsel %vm964, %v957, %v944
    %vm966 = vcmp.lt.s32.totalorder %v959, %v945
    %v967 = vsel %vm966, %v959, %v945
    %vm968 = vcmp.lt.s32.totalorder %v961, %v946
    %v969 = vsel %vm968, %v961, %v946
    %vm970 = vcmp.lt.s32.totalorder %v963, %v947
    %v971 = vsel %vm970, %v963, %v947
    %vm972 = vcmp.lt.s32.totalorder %v965, %v967
    %v973 = vsel %vm972, %v965, %v967
    %vm974 = vcmp.lt.s32.totalorder %v969, %v971
    %v975 = vsel %vm974, %v969, %v971
    %vm976 = vcmp.lt.s32.totalorder %v973, %v975
    %v977 = vsel %vm976, %v973, %v975
    %v978 = vrot.slane %v977, 4
    %vm979 = vcmp.lt.s32.totalorder %v977, %v978
    %v980 = vsel %vm979, %v977, %v978
    %v981 = vrot.slane %v980, 2
    %vm982 = vcmp.lt.s32.totalorder %v980, %v981
    %v983 = vsel %vm982, %v980, %v981
    %v984 = vrot.slane %v983, 1
    %vm985 = vcmp.lt.s32.totalorder %v983, %v984
    %v986 = vsel %vm985, %v983, %v984
    %s987 = scalar_lea.vmem %s0, 24
    %v988 = vld [vmem:[%s987] sm:$0x7]
    %v990 = vsel %vm112, %v988, 0
    %992 = vmatpush.bf16.msra.mxu0 0
    %993 = vmatpush.bf16.msra.mxu0 0
    %994 = vmatpush.bf16.msra.mxu0 0
    %995 = vmatpush.bf16.msra.mxu0 0
    %996 = vmatpush.bf16.msra.mxu0 0
    %997 = vmatpush.bf16.msra.mxu0 0
    %998 = vmatpush.bf16.msra.mxu0 0
    %999 = vmatpush.bf16.msra.mxu0 %v990
    %1000 = vmatmul.bf16.gmra.mxu0 %v89
    %v1001 = vpop.f32.mrf.mxu0
    %v1002 = vadd.f32 0.0, %v1001
    %v1003 = vpop.f32.mrf.mxu0
    %v1004 = vadd.f32 0.0, %v1003
    %1005 = vmatmul.bf16.gmra.mxu0 %v92
    %v1006 = vpop.f32.mrf.mxu0
    %v1007 = vadd.f32 0.0, %v1006
    %v1008 = vpop.f32.mrf.mxu0
    %v1009 = vadd.f32 0.0, %v1008
    %1010 = vmatmul.bf16.gmra.mxu0 %v95
    %v1011 = vpop.f32.mrf.mxu0
    %v1012 = vadd.f32 0.0, %v1011
    %v1013 = vpop.f32.mrf.mxu0
    %v1014 = vadd.f32 0.0, %v1013
    %1015 = vmatmul.bf16.gmra.mxu0 %v98
    %v1016 = vpop.f32.mrf.mxu0
    %v1017 = vadd.f32 0.0, %v1016
    %v1018 = vpop.f32.mrf.mxu0
    %v1019 = vadd.f32 0.0, %v1018
    %1020 = vmatmul.bf16.gmra.mxu0 %v101
    %v1021 = vpop.f32.mrf.mxu0
    %v1022 = vadd.f32 0.0, %v1021
    %v1023 = vpop.f32.mrf.mxu0
    %v1024 = vadd.f32 0.0, %v1023
    %1025 = vmatmul.bf16.gmra.mxu0 %v104
    %v1026 = vpop.f32.mrf.mxu0
    %v1027 = vadd.f32 0.0, %v1026
    %v1028 = vpop.f32.mrf.mxu0
    %v1029 = vadd.f32 0.0, %v1028
    %1030 = vmatmul.bf16.gmra.mxu0 %v107
    %v1031 = vpop.f32.mrf.mxu0
    %v1032 = vadd.f32 0.0, %v1031
    %v1033 = vpop.f32.mrf.mxu0
    %v1034 = vadd.f32 0.0, %v1033
    %1035 = vmatmul.bf16.gmra.mxu0 %v110
    %v1036 = vpop.f32.mrf.mxu0
    %v1037 = vadd.f32 0.0, %v1036
    %v1038 = vpop.f32.mrf.mxu0
    %v1039 = vadd.f32 0.0, %v1038
    %1040 = vdwg.mxu0
    %v1041 = vmin.f32 %v1002, %v1012
    %v1042 = vmin.f32 %v1004, %v1014
    %v1043 = vmin.f32 %v1007, %v1017
    %v1044 = vmin.f32 %v1009, %v1019
    %v1045 = vmin.f32 %v1041, %v1022
    %v1046 = vmin.f32 %v1042, %v1024
    %v1047 = vmin.f32 %v1043, %v1027
    %v1048 = vmin.f32 %v1044, %v1029
    %v1049 = vmin.f32 %v1045, %v1032
    %v1050 = vmin.f32 %v1046, %v1034
    %v1051 = vmin.f32 %v1047, %v1037
    %v1052 = vmin.f32 %v1048, %v1039
    %v1053 = vmin.f32 %v1049, %v1050
    %v1054 = vmin.f32 %v1051, %v1052
    %v1055 = vmin.f32 %v1053, %v1054
    %v1056 = vrot.slane %v1055, 4
    %v1057 = vmin.f32 %v1055, %v1056
    %v1058 = vrot.slane %v1057, 2
    %v1059 = vmin.f32 %v1057, %v1058
    %v1060 = vrot.slane %v1059, 1
    %v1061 = vmin.f32 %v1059, %v1060
    %vm1062 = vcmp.le.f32.partialorder %v1002, %v1061
    %vm1063 = vcmp.le.f32.partialorder %v1004, %v1061
    %vm1064 = vcmp.le.f32.partialorder %v1007, %v1061
    %vm1065 = vcmp.le.f32.partialorder %v1009, %v1061
    %vm1066 = vcmp.le.f32.partialorder %v1012, %v1061
    %vm1067 = vcmp.le.f32.partialorder %v1014, %v1061
    %vm1068 = vcmp.le.f32.partialorder %v1017, %v1061
    %vm1069 = vcmp.le.f32.partialorder %v1019, %v1061
    %vm1070 = vcmp.le.f32.partialorder %v1022, %v1061
    %vm1071 = vcmp.le.f32.partialorder %v1024, %v1061
    %vm1072 = vcmp.le.f32.partialorder %v1027, %v1061
    %vm1073 = vcmp.le.f32.partialorder %v1029, %v1061
    %vm1074 = vcmp.le.f32.partialorder %v1032, %v1061
    %vm1075 = vcmp.le.f32.partialorder %v1034, %v1061
    %vm1076 = vcmp.le.f32.partialorder %v1037, %v1061
    %vm1077 = vcmp.le.f32.partialorder %v1039, %v1061
    %v1078 = vsel %vm1062, %v30, 128
    %v1079 = vsel %vm1063, %v31, 128
    %v1080 = vsel %vm1064, %v32, 128
    %v1081 = vsel %vm1065, %v33, 128
    %v1082 = vsel %vm1066, %v34, 128
    %v1083 = vsel %vm1067, %v35, 128
    %v1084 = vsel %vm1068, %v36, 128
    %v1085 = vsel %vm1069, %v37, 128
    %v1086 = vsel %vm1070, %v38, 128
    %v1087 = vsel %vm1071, %v39, 128
    %v1088 = vsel %vm1072, %v40, 128
    %v1089 = vsel %vm1073, %v41, 128
    %v1090 = vsel %vm1074, %v42, 128
    %v1091 = vsel %vm1075, %v43, 128
    %v1092 = vsel %vm1076, %v44, 128
    %v1093 = vsel %vm1077, %v45, 128
    %vm1094 = vcmp.lt.s32.totalorder %v1078, %v1082
    %v1095 = vsel %vm1094, %v1078, %v1082
    %vm1096 = vcmp.lt.s32.totalorder %v1079, %v1083
    %v1097 = vsel %vm1096, %v1079, %v1083
    %vm1098 = vcmp.lt.s32.totalorder %v1080, %v1084
    %v1099 = vsel %vm1098, %v1080, %v1084
    %vm1100 = vcmp.lt.s32.totalorder %v1081, %v1085
    %v1101 = vsel %vm1100, %v1081, %v1085
    %vm1102 = vcmp.lt.s32.totalorder %v1095, %v1086
    %v1103 = vsel %vm1102, %v1095, %v1086
    %vm1104 = vcmp.lt.s32.totalorder %v1097, %v1087
    %v1105 = vsel %vm1104, %v1097, %v1087
    %vm1106 = vcmp.lt.s32.totalorder %v1099, %v1088
    %v1107 = vsel %vm1106, %v1099, %v1088
    %vm1108 = vcmp.lt.s32.totalorder %v1101, %v1089
    %v1109 = vsel %vm1108, %v1101, %v1089
    %vm1110 = vcmp.lt.s32.totalorder %v1103, %v1090
    %v1111 = vsel %vm1110, %v1103, %v1090
    %vm1112 = vcmp.lt.s32.totalorder %v1105, %v1091
    %v1113 = vsel %vm1112, %v1105, %v1091
    %vm1114 = vcmp.lt.s32.totalorder %v1107, %v1092
    %v1115 = vsel %vm1114, %v1107, %v1092
    %vm1116 = vcmp.lt.s32.totalorder %v1109, %v1093
    %v1117 = vsel %vm1116, %v1109, %v1093
    %vm1118 = vcmp.lt.s32.totalorder %v1111, %v1113
    %v1119 = vsel %vm1118, %v1111, %v1113
    %vm1120 = vcmp.lt.s32.totalorder %v1115, %v1117
    %v1121 = vsel %vm1120, %v1115, %v1117
    %vm1122 = vcmp.lt.s32.totalorder %v1119, %v1121
    %v1123 = vsel %vm1122, %v1119, %v1121
    %v1124 = vrot.slane %v1123, 4
    %vm1125 = vcmp.lt.s32.totalorder %v1123, %v1124
    %v1126 = vsel %vm1125, %v1123, %v1124
    %v1127 = vrot.slane %v1126, 2
    %vm1128 = vcmp.lt.s32.totalorder %v1126, %v1127
    %v1129 = vsel %vm1128, %v1126, %v1127
    %v1130 = vrot.slane %v1129, 1
    %vm1131 = vcmp.lt.s32.totalorder %v1129, %v1130
    %v1132 = vsel %vm1131, %v1129, %v1130
    %s1133 = scalar_lea.vmem %s0, 28
    %v1134 = vld [vmem:[%s1133] sm:$0x7]
    %v1136 = vsel %vm112, %v1134, 0
    %1138 = vmatpush.bf16.msra.mxu0 0
    %1139 = vmatpush.bf16.msra.mxu0 0
    %1140 = vmatpush.bf16.msra.mxu0 0
    %1141 = vmatpush.bf16.msra.mxu0 0
    %1142 = vmatpush.bf16.msra.mxu0 0
    %1143 = vmatpush.bf16.msra.mxu0 0
    %1144 = vmatpush.bf16.msra.mxu0 0
    %1145 = vmatpush.bf16.msra.mxu0 %v1136
    %1146 = vmatmul.bf16.gmra.mxu0 %v89
    %v1147 = vpop.f32.mrf.mxu0
    %v1148 = vadd.f32 0.0, %v1147
    %v1149 = vpop.f32.mrf.mxu0
    %v1150 = vadd.f32 0.0, %v1149
    %1151 = vmatmul.bf16.gmra.mxu0 %v92
    %v1152 = vpop.f32.mrf.mxu0
    %v1153 = vadd.f32 0.0, %v1152
    %v1154 = vpop.f32.mrf.mxu0
    %v1155 = vadd.f32 0.0, %v1154
    %1156 = vmatmul.bf16.gmra.mxu0 %v95
    %v1157 = vpop.f32.mrf.mxu0
    %v1158 = vadd.f32 0.0, %v1157
    %v1159 = vpop.f32.mrf.mxu0
    %v1160 = vadd.f32 0.0, %v1159
    %1161 = vmatmul.bf16.gmra.mxu0 %v98
    %v1162 = vpop.f32.mrf.mxu0
    %v1163 = vadd.f32 0.0, %v1162
    %v1164 = vpop.f32.mrf.mxu0
    %v1165 = vadd.f32 0.0, %v1164
    %1166 = vmatmul.bf16.gmra.mxu0 %v101
    %v1167 = vpop.f32.mrf.mxu0
    %v1168 = vadd.f32 0.0, %v1167
    %v1169 = vpop.f32.mrf.mxu0
    %v1170 = vadd.f32 0.0, %v1169
    %1171 = vmatmul.bf16.gmra.mxu0 %v104
    %v1172 = vpop.f32.mrf.mxu0
    %v1173 = vadd.f32 0.0, %v1172
    %v1174 = vpop.f32.mrf.mxu0
    %v1175 = vadd.f32 0.0, %v1174
    %1176 = vmatmul.bf16.gmra.mxu0 %v107
    %v1177 = vpop.f32.mrf.mxu0
    %v1178 = vadd.f32 0.0, %v1177
    %v1179 = vpop.f32.mrf.mxu0
    %v1180 = vadd.f32 0.0, %v1179
    %1181 = vmatmul.bf16.gmra.mxu0 %v110
    %v1182 = vpop.f32.mrf.mxu0
    %v1183 = vadd.f32 0.0, %v1182
    %v1184 = vpop.f32.mrf.mxu0
    %v1185 = vadd.f32 0.0, %v1184
    %1186 = vdwg.mxu0
    %v1187 = vmin.f32 %v1148, %v1158
    %v1188 = vmin.f32 %v1150, %v1160
    %v1189 = vmin.f32 %v1153, %v1163
    %v1190 = vmin.f32 %v1155, %v1165
    %v1191 = vmin.f32 %v1187, %v1168
    %v1192 = vmin.f32 %v1188, %v1170
    %v1193 = vmin.f32 %v1189, %v1173
    %v1194 = vmin.f32 %v1190, %v1175
    %v1195 = vmin.f32 %v1191, %v1178
    %v1196 = vmin.f32 %v1192, %v1180
    %v1197 = vmin.f32 %v1193, %v1183
    %v1198 = vmin.f32 %v1194, %v1185
    %v1199 = vmin.f32 %v1195, %v1196
    %v1200 = vmin.f32 %v1197, %v1198
    %v1201 = vmin.f32 %v1199, %v1200
    %v1202 = vrot.slane %v1201, 4
    %v1203 = vmin.f32 %v1201, %v1202
    %v1204 = vrot.slane %v1203, 2
    %v1205 = vmin.f32 %v1203, %v1204
    %v1206 = vrot.slane %v1205, 1
    %v1207 = vmin.f32 %v1205, %v1206
    %vm1208 = vcmp.le.f32.partialorder %v1148, %v1207
    %vm1209 = vcmp.le.f32.partialorder %v1150, %v1207
    %vm1210 = vcmp.le.f32.partialorder %v1153, %v1207
    %vm1211 = vcmp.le.f32.partialorder %v1155, %v1207
    %vm1212 = vcmp.le.f32.partialorder %v1158, %v1207
    %vm1213 = vcmp.le.f32.partialorder %v1160, %v1207
    %vm1214 = vcmp.le.f32.partialorder %v1163, %v1207
    %vm1215 = vcmp.le.f32.partialorder %v1165, %v1207
    %vm1216 = vcmp.le.f32.partialorder %v1168, %v1207
    %vm1217 = vcmp.le.f32.partialorder %v1170, %v1207
    %vm1218 = vcmp.le.f32.partialorder %v1173, %v1207
    %vm1219 = vcmp.le.f32.partialorder %v1175, %v1207
    %vm1220 = vcmp.le.f32.partialorder %v1178, %v1207
    %vm1221 = vcmp.le.f32.partialorder %v1180, %v1207
    %vm1222 = vcmp.le.f32.partialorder %v1183, %v1207
    %vm1223 = vcmp.le.f32.partialorder %v1185, %v1207
    %v1224 = vsel %vm1208, %v30, 128
    %v1225 = vsel %vm1209, %v31, 128
    %v1226 = vsel %vm1210, %v32, 128
    %v1227 = vsel %vm1211, %v33, 128
    %v1228 = vsel %vm1212, %v34, 128
    %v1229 = vsel %vm1213, %v35, 128
    %v1230 = vsel %vm1214, %v36, 128
    %v1231 = vsel %vm1215, %v37, 128
    %v1232 = vsel %vm1216, %v38, 128
    %v1233 = vsel %vm1217, %v39, 128
    %v1234 = vsel %vm1218, %v40, 128
    %v1235 = vsel %vm1219, %v41, 128
    %v1236 = vsel %vm1220, %v42, 128
    %v1237 = vsel %vm1221, %v43, 128
    %v1238 = vsel %vm1222, %v44, 128
    %v1239 = vsel %vm1223, %v45, 128
    %vm1240 = vcmp.lt.s32.totalorder %v1224, %v1228
    %v1241 = vsel %vm1240, %v1224, %v1228
    %vm1242 = vcmp.lt.s32.totalorder %v1225, %v1229
    %v1243 = vsel %vm1242, %v1225, %v1229
    %vm1244 = vcmp.lt.s32.totalorder %v1226, %v1230
    %v1245 = vsel %vm1244, %v1226, %v1230
    %vm1246 = vcmp.lt.s32.totalorder %v1227, %v1231
    %v1247 = vsel %vm1246, %v1227, %v1231
    %vm1248 = vcmp.lt.s32.totalorder %v1241, %v1232
    %v1249 = vsel %vm1248, %v1241, %v1232
    %vm1250 = vcmp.lt.s32.totalorder %v1243, %v1233
    %v1251 = vsel %vm1250, %v1243, %v1233
    %vm1252 = vcmp.lt.s32.totalorder %v1245, %v1234
    %v1253 = vsel %vm1252, %v1245, %v1234
    %vm1254 = vcmp.lt.s32.totalorder %v1247, %v1235
    %v1255 = vsel %vm1254, %v1247, %v1235
    %vm1256 = vcmp.lt.s32.totalorder %v1249, %v1236
    %v1257 = vsel %vm1256, %v1249, %v1236
    %vm1258 = vcmp.lt.s32.totalorder %v1251, %v1237
    %v1259 = vsel %vm1258, %v1251, %v1237
    %vm1260 = vcmp.lt.s32.totalorder %v1253, %v1238
    %v1261 = vsel %vm1260, %v1253, %v1238
    %vm1262 = vcmp.lt.s32.totalorder %v1255, %v1239
    %v1263 = vsel %vm1262, %v1255, %v1239
    %vm1264 = vcmp.lt.s32.totalorder %v1257, %v1259
    %v1265 = vsel %vm1264, %v1257, %v1259
    %vm1266 = vcmp.lt.s32.totalorder %v1261, %v1263
    %v1267 = vsel %vm1266, %v1261, %v1263
    %vm1268 = vcmp.lt.s32.totalorder %v1265, %v1267
    %v1269 = vsel %vm1268, %v1265, %v1267
    %v1270 = vrot.slane %v1269, 4
    %vm1271 = vcmp.lt.s32.totalorder %v1269, %v1270
    %v1272 = vsel %vm1271, %v1269, %v1270
    %v1273 = vrot.slane %v1272, 2
    %vm1274 = vcmp.lt.s32.totalorder %v1272, %v1273
    %v1275 = vsel %vm1274, %v1272, %v1273
    %v1276 = vrot.slane %v1275, 1
    %vm1277 = vcmp.lt.s32.totalorder %v1275, %v1276
    %v1278 = vsel %vm1277, %v1275, %v1276
    %vm1279 = vcmask 1040384
    %v1280 = vsel %vm1279, %v256, %v402
    %vm1281 = vcmask 1041408
    %v1282 = vsel %vm1281, %v1280, %v548
    %v1283 = vsel %vm112, %v1282, %v694
    %vm1284 = vcmask 1043456
    %v1285 = vsel %vm1284, %v1283, %v840
    %vm1286 = vcmask 1044480
    %v1287 = vsel %vm1286, %v1285, %v986
    %vm1288 = vcmask 1045504
    %v1289 = vsel %vm1288, %v1287, %v1132
    %vm1290 = vcmask 1046528
    %v1291 = vsel %vm1290, %v1289, %v1278
    %v1292 = vadd.s32 %v1291, 1
    %1293 = vst [vmem:[#allocation2] sm:$0xff] %v1292
    // Predicated region
    $region10: #{tpu_custom_call.1} parent=1 // pred_check
      _
    $region11: #{tpu_custom_call.1} parent=1 // pred_check_branch
      %1295 = sbr.rel (0) target = $region13
    $region12: #{tpu_custom_call.1} parent=1 // pred_region
      %1297 = vsyncadd [#allocation3], 0
      %s1299 = sshll.u32 [#allocation2], 4
      %s1300 = int_to_ptr.vmem [resolvable:$true] %s1299
      %s1301 = sshll.u32 %s2, 4
      %s1302 = int_to_ptr.hbm [resolvable:$true] %s1301
      %1304 = dma.vmem_to_hbm [thread:$0]  %s1300, 128, %s1302, [#allocation3]
    $region13: #{tpu_custom_call.1} parent=1 // pred_fallthru
      _
    // Predicated region
    $region14: #{tpu_custom_call.1} parent=1 // pred_check
      _
    $region15: #{tpu_custom_call.1} parent=1 // pred_check_branch
      %1306 = sbr.rel (0) target = $region17
    $region16: #{tpu_custom_call.1} parent=1 // pred_region
      %1308 = dma.done [#allocation3], 128
    $region17: #{tpu_custom_call.1} parent=1 // pred_fallthru
      _
    %1309 = vsyncpa [#allocation3], 1

</llo_original>
